<compile_context>
chip_gen: v6e
topology: v6e:2x2x1
jax: 0.10.0
libtpu: 0.0.40
codegen_flags: <defaults>
</compile_context>

<pallas_src>
import functools
import math

import jax
import jax.numpy as jnp
from jax import lax
from jax.experimental import pallas as pl
from jax.experimental.pallas import tpu as pltpu


# bf16 is the native MXU operand format on TPU; fall back to f32 elsewhere
# (e.g. CPU interpret harness, whose dot executor rejects BF16xBF16=F32).
_ON_TPU = jax.default_backend() == "tpu"
MATMUL_DTYPE = jnp.bfloat16 if _ON_TPU else jnp.float32
STORE_DTYPE = MATMUL_DTYPE   # xg0 / seq / gates scratch storage dtype


def _round_up(x, m):
    return -(-x // m) * m


# ----------------------------- fused LSTM kernel -----------------------------
def _build_fused_lstm_kernel(n_layers, T, B, H, unroll):
    """All LSTM layers (in-kernel time loop) + fused final linear. B = padded batch."""
    multi = n_layers > 1

    def kernel(*refs):
        idx = 0
        xg0_ref = refs[idx]; idx += 1                                  # (T, B, 4H) layer-0 x-proj (+bias)
        whh_refs = refs[idx:idx + n_layers]; idx += n_layers           # (H, 4H) per layer
        wih_refs = refs[idx:idx + n_layers - 1]; idx += n_layers - 1   # (H, 4H) layers >= 1
        b_refs = refs[idx:idx + n_layers - 1]; idx += n_layers - 1     # (1, 4H) f32 layers >= 1
        wlin_ref = refs[idx]; idx += 1                                 # (H, O_pad)
        blin_ref = refs[idx]; idx += 1                                 # (1, O_pad) f32
        out_ref = refs[idx]; idx += 1                                  # (B, O_pad) f32
        if multi:
            seq_sc = refs[idx]; idx += 1                               # (T*B, H)  prev layer output seq
            gates_sc = refs[idx]; idx += 1                             # (T*B, 4H) current layer x-proj

        def run_layer(read_gates, whh_ref, write_seq):
            whh = whh_ref[...]  # resident for the whole layer

            def step(t, carry):
                h, c = carry
                gates = read_gates(t).astype(jnp.float32) + jnp.dot(
                    h.astype(whh.dtype), whh, preferred_element_type=jnp.float32)
                # Gate order is [i, f, o, g]: sigmoid on the first 3H lanes only,
                # tanh on the last H lanes only (half the transcendental work).
                sig = jax.nn.sigmoid(gates[:, : 3 * H])
                g_g = jnp.tanh(gates[:, 3 * H:])
                i_g = sig[:, 0 * H:1 * H]
                f_g = sig[:, 1 * H:2 * H]
                o_g = sig[:, 2 * H:3 * H]
                c_new = f_g * c + i_g * g_g
                h_new = o_g * jnp.tanh(c_new)
                if write_seq:
                    row = pl.multiple_of(t * B, 8)
                    seq_sc[pl.ds(row, B), :] = h_new.astype(seq_sc.dtype)
                return h_new, c_new

            h0 = jnp.zeros((B, H), jnp.float32)
            c0 = jnp.zeros((B, H), jnp.float32)
            h_last, _ = lax.fori_loop(0, T, step, (h0, c0), unroll=unroll)
            return h_last

        # ----- layer 0: input projection precomputed outside the kernel -----
        h_last = run_layer(lambda t: xg0_ref[t], whh_refs[0], write_seq=multi)

        # ----- layers 1 .. n_layers-1 -----
        for l in range(1, n_layers):
            wih = wih_refs[l - 1][...]
            bias = b_refs[l - 1][...]
            # Batched input projection: ONE (T*B, H) @ (H, 4H) matmul, off the
            # sequential recurrence critical path.
            gx = jnp.dot(seq_sc[...].astype(wih.dtype), wih,
                         preferred_element_type=jnp.float32) + bias
            gates_sc[...] = gx.astype(gates_sc.dtype)

            def read_gates(t):
                row = pl.multiple_of(t * B, 8)
                return gates_sc[pl.ds(row, B), :]

            h_last = run_layer(read_gates, whh_refs[l],
                               write_seq=(l < n_layers - 1))

        # ----- fused final linear: (B, H) @ (H, O_pad) + b -----
        y = jnp.dot(h_last.astype(wlin_ref.dtype), wlin_ref[...],
                    preferred_element_type=jnp.float32) + blin_ref[...]
        out_ref[...] = y.astype(out_ref.dtype)

    return kernel


# ------------------------------- parameter init -------------------------------
def _reorder_gate_rows(w):
    """Permute PyTorch gate order [i, f, g, o] (leading 4H axis) -> [i, f, o, g]."""
    H = w.shape[0] // 4
    return jnp.concatenate(
        [w[0 * H:1 * H], w[1 * H:2 * H], w[3 * H:4 * H], w[2 * H:3 * H]], axis=0)


def init_lstm_params(key, enc_in, d_model, n_layers, pred_len):
    """Deterministic init mimicking PyTorch's U(-1/sqrt(H), 1/sqrt(H))."""
    params = {"layers": []}
    bound = 1.0 / math.sqrt(d_model)
    for l in range(n_layers):
        in_feat = enc_in if l == 0 else d_model
        key, k1, k2, k3, k4 = jax.random.split(key, 5)
        w_ih = jax.random.uniform(k1, (4 * d_model, in_feat), jnp.float32, -bound, bound)
        w_hh = jax.random.uniform(k2, (4 * d_model, d_model), jnp.float32, -bound, bound)
        b_ih = jax.random.uniform(k3, (4 * d_model,), jnp.float32, -bound, bound)
        b_hh = jax.random.uniform(k4, (4 * d_model,), jnp.float32, -bound, bound)
        # Reorder gate columns to [i, f, o, g], pre-transpose for x @ W^T.
        w_ih_r = _reorder_gate_rows(w_ih)
        w_hh_r = _reorder_gate_rows(w_hh)
        bias_r = _reorder_gate_rows((b_ih + b_hh)[:, None])[:, 0]
        params["layers"].append({
            "w_ih_t": w_ih_r.T.astype(MATMUL_DTYPE),
            "w_hh_t": w_hh_r.T.astype(MATMUL_DTYPE),
            "bias": bias_r,                           # combined bias, f32
        })
    key, k1, k2 = jax.random.split(key, 3)
    out_feat = pred_len * enc_in
    w_lin = jax.random.uniform(k1, (out_feat, d_model), jnp.float32, -bound, bound)
    b_lin = jax.random.uniform(k2, (out_feat,), jnp.float32, -bound, bound)
    params["linear"] = {"w_t": w_lin.T.astype(MATMUL_DTYPE), "b": b_lin}
    return params


# ------------------------------- forward wrapper -------------------------------
@functools.partial(jax.jit, static_argnames=("enc_in", "pred_len"))
def lstm_forward(params, x, *, enc_in, pred_len):
    """x: (B, T, enc_in) -> (B, pred_len, enc_in)."""
    B, T, _ = x.shape
    layers = params["layers"]
    n_layers = len(layers)
    H = layers[0]["w_hh_t"].shape[0]
    O = pred_len * enc_in

    # Pad batch to a multiple of 8 sublanes (dense vector work / unmasked stores).
    B_pad = max(8, _round_up(B, 8))
    if B_pad != B:
        x = jnp.pad(x, ((0, B_pad - B), (0, 0), (0, 0)))

    # Pad final-linear output to 128 lanes.
    O_pad = _round_up(O, 128)
    w_lin = params["linear"]["w_t"]
    b_lin = params["linear"]["b"]
    if O_pad != O:
        w_lin = jnp.pad(w_lin, ((0, 0), (0, O_pad - O)))
        b_lin = jnp.pad(b_lin, ((0, O_pad - O),))

    # Layer-0 input projection for all (t, b) at once (one matmul over T*B rows,
    # done by XLA), combined bias folded in, stored in the compact dtype.
    xg0 = (jnp.einsum("bti,ig->tbg", x.astype(MATMUL_DTYPE), layers[0]["w_ih_t"],
                      preferred_element_type=jnp.float32)
           + layers[0]["bias"][None, None, :]).astype(STORE_DTYPE)

    inputs = [xg0]
    inputs += [lyr["w_hh_t"] for lyr in layers]
    inputs += [lyr["w_ih_t"] for lyr in layers[1:]]
    inputs += [lyr["bias"].reshape(1, 4 * H) for lyr in layers[1:]]
    inputs += [w_lin, b_lin.reshape(1, O_pad)]

    scratch = []
    if n_layers > 1:
        scratch = [
            pltpu.VMEM((T * B_pad, H), STORE_DTYPE),      # previous layer output sequence
            pltpu.VMEM((T * B_pad, 4 * H), STORE_DTYPE),  # current layer input projection
        ]

    # VMEM budget (defaults are 16/32 MiB scoped; physical is far larger).
    sb = jnp.dtype(STORE_DTYPE).itemsize
    mb = jnp.dtype(MATMUL_DTYPE).itemsize
    total_bytes = (T * B_pad * 4 * H * sb                                   # xg0
                   + (T * B_pad * 5 * H * sb if n_layers > 1 else 0)        # scratch
                   + (2 * n_layers - 1) * H * 4 * H * mb                    # recurrent/ih weights
                   + (n_layers - 1) * 4 * H * 4                             # biases
                   + H * O_pad * mb + O_pad * 4 + B_pad * O_pad * 4)        # linear + out
    vmem_limit = int(min(100 * (1 << 20), max(32 * (1 << 20), 2 * total_bytes + (4 << 20))))

    # Integer partial unroll: full for short T, 8 otherwise (scheduler visibility).
    unroll = T if T <= 32 else 8
    kernel = _build_fused_lstm_kernel(n_layers, T, B_pad, H, unroll)

    vmem_spec = pl.BlockSpec(memory_space=pltpu.MemorySpace.VMEM)
    y = pl.pallas_call(
        kernel,
        out_shape=jax.ShapeDtypeStruct((B_pad, O_pad), jnp.float32),
        in_specs=[vmem_spec] * len(inputs),
        out_specs=vmem_spec,
        scratch_shapes=scratch,
        compiler_params=pltpu.CompilerParams(vmem_limit_bytes=vmem_limit),
    )(*inputs)
    return y[:B, :O].reshape(B, pred_len, enc_in)


# ----------------------------------- main ------------------------------------
if __name__ == "__main__":
    # Small shapes consistent with the module's forward.
    B, T = 2, 8
    enc_in, d_model, n_layers, pred_len = 4, 32, 2, 3

    key = jax.random.PRNGKey(0)
    key, xk, pk = jax.random.split(key, 3)
    x = jax.random.normal(xk, (B, T, enc_in), dtype=jnp.float32)
    params = init_lstm_params(pk, enc_in, d_model, n_layers, pred_len)

    y = lstm_forward(params, x, enc_in=enc_in, pred_len=pred_len)
    y = jax.block_until_ready(y)
    assert y.shape == (B, pred_len, enc_in), y.shape
    assert bool(jnp.all(jnp.isfinite(y)))
    print("KERNEL_OK")
</pallas_src>

<mosaic_0001>
module attributes {stable_mosaic.version = 11 : i64} {
  func.func @kernel(%arg0: memref<8x8x128xf32, #tpu.memory_space<vmem>>, %arg1: memref<32x128xf32, #tpu.memory_space<vmem>>, %arg2: memref<32x128xf32, #tpu.memory_space<vmem>>, %arg3: memref<32x128xf32, #tpu.memory_space<vmem>>, %arg4: memref<1x128xf32, #tpu.memory_space<vmem>>, %arg5: memref<32x128xf32, #tpu.memory_space<vmem>>, %arg6: memref<1x128xf32, #tpu.memory_space<vmem>>, %arg7: memref<8x128xf32, #tpu.memory_space<vmem>>, %arg8: memref<64x32xf32, #tpu.memory_space<vmem>>, %arg9: memref<64x128xf32, #tpu.memory_space<vmem>>) attributes {dimension_semantics = [], scalar_prefetch = 0 : i64, scratch_operands = 2 : i64, tpu.core_type = #tpu.core_type<tc>} {
    %c0 = arith.constant 0 : index
    %c0_0 = arith.constant 0 : index
    %0 = vector.load %arg1[%c0, %c0_0] : memref<32x128xf32, #tpu.memory_space<vmem>>, vector<32x128xf32>
    %cst = arith.constant 0.000000e+00 : f32
    %1 = vector.broadcast %cst : f32 to vector<8x32xf32>
    %cst_1 = arith.constant 0.000000e+00 : f32
    %2 = vector.broadcast %cst_1 : f32 to vector<8x32xf32>
    %c0_i32 = arith.constant 0 : i32
    %3 = arith.index_cast %c0_i32 : i32 to index
    %c0_2 = arith.constant 0 : index
    %c0_3 = arith.constant 0 : index
    %4 = vector.load %arg0[%3, %c0_2, %c0_3] : memref<8x8x128xf32, #tpu.memory_space<vmem>>, vector<1x8x128xf32>
    %5 = vector.shape_cast %4 : vector<1x8x128xf32> to vector<8x128xf32>
    %cst_4 = arith.constant dense<0.000000e+00> : vector<8x128xf32>
    %6 = tpu.matmul %1, %0, %cst_4 {dimension_numbers = #tpu.dot_dimension_numbers<[1], [0], [0], [1], [0, 0, 1, 1], [], []>} : vector<8x32xf32>, vector<32x128xf32>, vector<8x128xf32> -> vector<8x128xf32>
    %7 = arith.addf %5, %6 : vector<8x128xf32>
    %8 = vector.extract_strided_slice %7 {offsets = [0, 0], sizes = [8, 96], strides = [1, 1]} : vector<8x128xf32> to vector<8x96xf32>
    %9 = arith.negf %8 : vector<8x96xf32>
    %10 = math.exp %9 : vector<8x96xf32>
    %cst_5 = arith.constant 1.000000e+00 : f32
    %11 = vector.broadcast %cst_5 : f32 to vector<8x96xf32>
    %12 = arith.addf %11, %10 : vector<8x96xf32>
    %13 = arith.divf %11, %12 : vector<8x96xf32>
    %14 = vector.extract_strided_slice %7 {offsets = [0, 96], sizes = [8, 32], strides = [1, 1]} : vector<8x128xf32> to vector<8x32xf32>
    %15 = math.tanh %14 : vector<8x32xf32>
    %16 = vector.extract_strided_slice %13 {offsets = [0, 0], sizes = [8, 32], strides = [1, 1]} : vector<8x96xf32> to vector<8x32xf32>
    %17 = vector.extract_strided_slice %13 {offsets = [0, 32], sizes = [8, 32], strides = [1, 1]} : vector<8x96xf32> to vector<8x32xf32>
    %18 = vector.extract_strided_slice %13 {offsets = [0, 64], sizes = [8, 32], strides = [1, 1]} : vector<8x96xf32> to vector<8x32xf32>
    %19 = arith.mulf %17, %2 : vector<8x32xf32>
    %20 = arith.mulf %16, %15 : vector<8x32xf32>
    %21 = arith.addf %19, %20 : vector<8x32xf32>
    %22 = math.tanh %21 : vector<8x32xf32>
    %23 = arith.mulf %18, %22 : vector<8x32xf32>
    %c8_i32 = arith.constant 8 : i32
    %24 = arith.muli %c0_i32, %c8_i32 : i32
    %25 = tpu.assume_multiple %24, 8 : i32
    %26 = arith.index_cast %25 : i32 to index
    %c0_6 = arith.constant 0 : index
    %27 = vector.load %arg8[%26, %c0_6] : memref<64x32xf32, #tpu.memory_space<vmem>>, vector<8x32xf32>
    tpu.vector_store %arg8[%26, %c0_6], %23 {strides = array<i32>} : memref<64x32xf32, #tpu.memory_space<vmem>>, vector<8x32xf32>,
    %c1_i32 = arith.constant 1 : i32
    %28 = arith.index_cast %c1_i32 : i32 to index
    %c0_7 = arith.constant 0 : index
    %c0_8 = arith.constant 0 : index
    %29 = vector.load %arg0[%28, %c0_7, %c0_8] : memref<8x8x128xf32, #tpu.memory_space<vmem>>, vector<1x8x128xf32>
    %30 = vector.shape_cast %29 : vector<1x8x128xf32> to vector<8x128xf32>
    %cst_9 = arith.constant dense<0.000000e+00> : vector<8x128xf32>
    %31 = tpu.matmul %23, %0, %cst_9 {dimension_numbers = #tpu.dot_dimension_numbers<[1], [0], [0], [1], [0, 0, 1, 1], [], []>} : vector<8x32xf32>, vector<32x128xf32>, vector<8x128xf32> -> vector<8x128xf32>
    %32 = arith.addf %30, %31 : vector<8x128xf32>
    %33 = vector.extract_strided_slice %32 {offsets = [0, 0], sizes = [8, 96], strides = [1, 1]} : vector<8x128xf32> to vector<8x96xf32>
    %34 = arith.negf %33 : vector<8x96xf32>
    %35 = math.exp %34 : vector<8x96xf32>
    %cst_10 = arith.constant 1.000000e+00 : f32
    %36 = vector.broadcast %cst_10 : f32 to vector<8x96xf32>
    %37 = arith.addf %36, %35 : vector<8x96xf32>
    %38 = arith.divf %36, %37 : vector<8x96xf32>
    %39 = vector.extract_strided_slice %32 {offsets = [0, 96], sizes = [8, 32], strides = [1, 1]} : vector<8x128xf32> to vector<8x32xf32>
    %40 = math.tanh %39 : vector<8x32xf32>
    %41 = vector.extract_strided_slice %38 {offsets = [0, 0], sizes = [8, 32], strides = [1, 1]} : vector<8x96xf32> to vector<8x32xf32>
    %42 = vector.extract_strided_slice %38 {offsets = [0, 32], sizes = [8, 32], strides = [1, 1]} : vector<8x96xf32> to vector<8x32xf32>
    %43 = vector.extract_strided_slice %38 {offsets = [0, 64], sizes = [8, 32], strides = [1, 1]} : vector<8x96xf32> to vector<8x32xf32>
    %44 = arith.mulf %42, %21 : vector<8x32xf32>
    %45 = arith.mulf %41, %40 : vector<8x32xf32>
    %46 = arith.addf %44, %45 : vector<8x32xf32>
    %47 = math.tanh %46 : vector<8x32xf32>
    %48 = arith.mulf %43, %47 : vector<8x32xf32>
    %c8_i32_11 = arith.constant 8 : i32
    %49 = arith.muli %c1_i32, %c8_i32_11 : i32
    %50 = tpu.assume_multiple %49, 8 : i32
    %51 = arith.index_cast %50 : i32 to index
    %c0_12 = arith.constant 0 : index
    %52 = vector.load %arg8[%51, %c0_12] : memref<64x32xf32, #tpu.memory_space<vmem>>, vector<8x32xf32>
    tpu.vector_store %arg8[%51, %c0_12], %48 {strides = array<i32>} : memref<64x32xf32, #tpu.memory_space<vmem>>, vector<8x32xf32>,
    %c2_i32 = arith.constant 2 : i32
    %53 = arith.index_cast %c2_i32 : i32 to index
    %c0_13 = arith.constant 0 : index
    %c0_14 = arith.constant 0 : index
    %54 = vector.load %arg0[%53, %c0_13, %c0_14] : memref<8x8x128xf32, #tpu.memory_space<vmem>>, vector<1x8x128xf32>
    %55 = vector.shape_cast %54 : vector<1x8x128xf32> to vector<8x128xf32>
    %cst_15 = arith.constant dense<0.000000e+00> : vector<8x128xf32>
    %56 = tpu.matmul %48, %0, %cst_15 {dimension_numbers = #tpu.dot_dimension_numbers<[1], [0], [0], [1], [0, 0, 1, 1], [], []>} : vector<8x32xf32>, vector<32x128xf32>, vector<8x128xf32> -> vector<8x128xf32>
    %57 = arith.addf %55, %56 : vector<8x128xf32>
    %58 = vector.extract_strided_slice %57 {offsets = [0, 0], sizes = [8, 96], strides = [1, 1]} : vector<8x128xf32> to vector<8x96xf32>
    %59 = arith.negf %58 : vector<8x96xf32>
    %60 = math.exp %59 : vector<8x96xf32>
    %cst_16 = arith.constant 1.000000e+00 : f32
    %61 = vector.broadcast %cst_16 : f32 to vector<8x96xf32>
    %62 = arith.addf %61, %60 : vector<8x96xf32>
    %63 = arith.divf %61, %62 : vector<8x96xf32>
    %64 = vector.extract_strided_slice %57 {offsets = [0, 96], sizes = [8, 32], strides = [1, 1]} : vector<8x128xf32> to vector<8x32xf32>
    %65 = math.tanh %64 : vector<8x32xf32>
    %66 = vector.extract_strided_slice %63 {offsets = [0, 0], sizes = [8, 32], strides = [1, 1]} : vector<8x96xf32> to vector<8x32xf32>
    %67 = vector.extract_strided_slice %63 {offsets = [0, 32], sizes = [8, 32], strides = [1, 1]} : vector<8x96xf32> to vector<8x32xf32>
    %68 = vector.extract_strided_slice %63 {offsets = [0, 64], sizes = [8, 32], strides = [1, 1]} : vector<8x96xf32> to vector<8x32xf32>
    %69 = arith.mulf %67, %46 : vector<8x32xf32>
    %70 = arith.mulf %66, %65 : vector<8x32xf32>
    %71 = arith.addf %69, %70 : vector<8x32xf32>
    %72 = math.tanh %71 : vector<8x32xf32>
    %73 = arith.mulf %68, %72 : vector<8x32xf32>
    %c8_i32_17 = arith.constant 8 : i32
    %74 = arith.muli %c2_i32, %c8_i32_17 : i32
    %75 = tpu.assume_multiple %74, 8 : i32
    %76 = arith.index_cast %75 : i32 to index
    %c0_18 = arith.constant 0 : index
    %77 = vector.load %arg8[%76, %c0_18] : memref<64x32xf32, #tpu.memory_space<vmem>>, vector<8x32xf32>
    tpu.vector_store %arg8[%76, %c0_18], %73 {strides = array<i32>} : memref<64x32xf32, #tpu.memory_space<vmem>>, vector<8x32xf32>,
    %c3_i32 = arith.constant 3 : i32
    %78 = arith.index_cast %c3_i32 : i32 to index
    %c0_19 = arith.constant 0 : index
    %c0_20 = arith.constant 0 : index
    %79 = vector.load %arg0[%78, %c0_19, %c0_20] : memref<8x8x128xf32, #tpu.memory_space<vmem>>, vector<1x8x128xf32>
    %80 = vector.shape_cast %79 : vector<1x8x128xf32> to vector<8x128xf32>
    %cst_21 = arith.constant dense<0.000000e+00> : vector<8x128xf32>
    %81 = tpu.matmul %73, %0, %cst_21 {dimension_numbers = #tpu.dot_dimension_numbers<[1], [0], [0], [1], [0, 0, 1, 1], [], []>} : vector<8x32xf32>, vector<32x128xf32>, vector<8x128xf32> -> vector<8x128xf32>
    %82 = arith.addf %80, %81 : vector<8x128xf32>
    %83 = vector.extract_strided_slice %82 {offsets = [0, 0], sizes = [8, 96], strides = [1, 1]} : vector<8x128xf32> to vector<8x96xf32>
    %84 = arith.negf %83 : vector<8x96xf32>
    %85 = math.exp %84 : vector<8x96xf32>
    %cst_22 = arith.constant 1.000000e+00 : f32
    %86 = vector.broadcast %cst_22 : f32 to vector<8x96xf32>
    %87 = arith.addf %86, %85 : vector<8x96xf32>
    %88 = arith.divf %86, %87 : vector<8x96xf32>
    %89 = vector.extract_strided_slice %82 {offsets = [0, 96], sizes = [8, 32], strides = [1, 1]} : vector<8x128xf32> to vector<8x32xf32>
    %90 = math.tanh %89 : vector<8x32xf32>
    %91 = vector.extract_strided_slice %88 {offsets = [0, 0], sizes = [8, 32], strides = [1, 1]} : vector<8x96xf32> to vector<8x32xf32>
    %92 = vector.extract_strided_slice %88 {offsets = [0, 32], sizes = [8, 32], strides = [1, 1]} : vector<8x96xf32> to vector<8x32xf32>
    %93 = vector.extract_strided_slice %88 {offsets = [0, 64], sizes = [8, 32], strides = [1, 1]} : vector<8x96xf32> to vector<8x32xf32>
    %94 = arith.mulf %92, %71 : vector<8x32xf32>
    %95 = arith.mulf %91, %90 : vector<8x32xf32>
    %96 = arith.addf %94, %95 : vector<8x32xf32>
    %97 = math.tanh %96 : vector<8x32xf32>
    %98 = arith.mulf %93, %97 : vector<8x32xf32>
    %c8_i32_23 = arith.constant 8 : i32
    %99 = arith.muli %c3_i32, %c8_i32_23 : i32
    %100 = tpu.assume_multiple %99, 8 : i32
    %101 = arith.index_cast %100 : i32 to index
    %c0_24 = arith.constant 0 : index
    %102 = vector.load %arg8[%101, %c0_24] : memref<64x32xf32, #tpu.memory_space<vmem>>, vector<8x32xf32>
    tpu.vector_store %arg8[%101, %c0_24], %98 {strides = array<i32>} : memref<64x32xf32, #tpu.memory_space<vmem>>, vector<8x32xf32>,
    %c4_i32 = arith.constant 4 : i32
    %103 = arith.index_cast %c4_i32 : i32 to index
    %c0_25 = arith.constant 0 : index
    %c0_26 = arith.constant 0 : index
    %104 = vector.load %arg0[%103, %c0_25, %c0_26] : memref<8x8x128xf32, #tpu.memory_space<vmem>>, vector<1x8x128xf32>
    %105 = vector.shape_cast %104 : vector<1x8x128xf32> to vector<8x128xf32>
    %cst_27 = arith.constant dense<0.000000e+00> : vector<8x128xf32>
    %106 = tpu.matmul %98, %0, %cst_27 {dimension_numbers = #tpu.dot_dimension_numbers<[1], [0], [0], [1], [0, 0, 1, 1], [], []>} : vector<8x32xf32>, vector<32x128xf32>, vector<8x128xf32> -> vector<8x128xf32>
    %107 = arith.addf %105, %106 : vector<8x128xf32>
    %108 = vector.extract_strided_slice %107 {offsets = [0, 0], sizes = [8, 96], strides = [1, 1]} : vector<8x128xf32> to vector<8x96xf32>
    %109 = arith.negf %108 : vector<8x96xf32>
    %110 = math.exp %109 : vector<8x96xf32>
    %cst_28 = arith.constant 1.000000e+00 : f32
    %111 = vector.broadcast %cst_28 : f32 to vector<8x96xf32>
    %112 = arith.addf %111, %110 : vector<8x96xf32>
    %113 = arith.divf %111, %112 : vector<8x96xf32>
    %114 = vector.extract_strided_slice %107 {offsets = [0, 96], sizes = [8, 32], strides = [1, 1]} : vector<8x128xf32> to vector<8x32xf32>
    %115 = math.tanh %114 : vector<8x32xf32>
    %116 = vector.extract_strided_slice %113 {offsets = [0, 0], sizes = [8, 32], strides = [1, 1]} : vector<8x96xf32> to vector<8x32xf32>
    %117 = vector.extract_strided_slice %113 {offsets = [0, 32], sizes = [8, 32], strides = [1, 1]} : vector<8x96xf32> to vector<8x32xf32>
    %118 = vector.extract_strided_slice %113 {offsets = [0, 64], sizes = [8, 32], strides = [1, 1]} : vector<8x96xf32> to vector<8x32xf32>
    %119 = arith.mulf %117, %96 : vector<8x32xf32>
    %120 = arith.mulf %116, %115 : vector<8x32xf32>
    %121 = arith.addf %119, %120 : vector<8x32xf32>
    %122 = math.tanh %121 : vector<8x32xf32>
    %123 = arith.mulf %118, %122 : vector<8x32xf32>
    %c8_i32_29 = arith.constant 8 : i32
    %124 = arith.muli %c4_i32, %c8_i32_29 : i32
    %125 = tpu.assume_multiple %124, 8 : i32
    %126 = arith.index_cast %125 : i32 to index
    %c0_30 = arith.constant 0 : index
    %127 = vector.load %arg8[%126, %c0_30] : memref<64x32xf32, #tpu.memory_space<vmem>>, vector<8x32xf32>
    tpu.vector_store %arg8[%126, %c0_30], %123 {strides = array<i32>} : memref<64x32xf32, #tpu.memory_space<vmem>>, vector<8x32xf32>,
    %c5_i32 = arith.constant 5 : i32
    %128 = arith.index_cast %c5_i32 : i32 to index
    %c0_31 = arith.constant 0 : index
    %c0_32 = arith.constant 0 : index
    %129 = vector.load %arg0[%128, %c0_31, %c0_32] : memref<8x8x128xf32, #tpu.memory_space<vmem>>, vector<1x8x128xf32>
    %130 = vector.shape_cast %129 : vector<1x8x128xf32> to vector<8x128xf32>
    %cst_33 = arith.constant dense<0.000000e+00> : vector<8x128xf32>
    %131 = tpu.matmul %123, %0, %cst_33 {dimension_numbers = #tpu.dot_dimension_numbers<[1], [0], [0], [1], [0, 0, 1, 1], [], []>} : vector<8x32xf32>, vector<32x128xf32>, vector<8x128xf32> -> vector<8x128xf32>
    %132 = arith.addf %130, %131 : vector<8x128xf32>
    %133 = vector.extract_strided_slice %132 {offsets = [0, 0], sizes = [8, 96], strides = [1, 1]} : vector<8x128xf32> to vector<8x96xf32>
    %134 = arith.negf %133 : vector<8x96xf32>
    %135 = math.exp %134 : vector<8x96xf32>
    %cst_34 = arith.constant 1.000000e+00 : f32
    %136 = vector.broadcast %cst_34 : f32 to vector<8x96xf32>
    %137 = arith.addf %136, %135 : vector<8x96xf32>
    %138 = arith.divf %136, %137 : vector<8x96xf32>
    %139 = vector.extract_strided_slice %132 {offsets = [0, 96], sizes = [8, 32], strides = [1, 1]} : vector<8x128xf32> to vector<8x32xf32>
    %140 = math.tanh %139 : vector<8x32xf32>
    %141 = vector.extract_strided_slice %138 {offsets = [0, 0], sizes = [8, 32], strides = [1, 1]} : vector<8x96xf32> to vector<8x32xf32>
    %142 = vector.extract_strided_slice %138 {offsets = [0, 32], sizes = [8, 32], strides = [1, 1]} : vector<8x96xf32> to vector<8x32xf32>
    %143 = vector.extract_strided_slice %138 {offsets = [0, 64], sizes = [8, 32], strides = [1, 1]} : vector<8x96xf32> to vector<8x32xf32>
    %144 = arith.mulf %142, %121 : vector<8x32xf32>
    %145 = arith.mulf %141, %140 : vector<8x32xf32>
    %146 = arith.addf %144, %145 : vector<8x32xf32>
    %147 = math.tanh %146 : vector<8x32xf32>
    %148 = arith.mulf %143, %147 : vector<8x32xf32>
    %c8_i32_35 = arith.constant 8 : i32
    %149 = arith.muli %c5_i32, %c8_i32_35 : i32
    %150 = tpu.assume_multiple %149, 8 : i32
    %151 = arith.index_cast %150 : i32 to index
    %c0_36 = arith.constant 0 : index
    %152 = vector.load %arg8[%151, %c0_36] : memref<64x32xf32, #tpu.memory_space<vmem>>, vector<8x32xf32>
    tpu.vector_store %arg8[%151, %c0_36], %148 {strides = array<i32>} : memref<64x32xf32, #tpu.memory_space<vmem>>, vector<8x32xf32>,
    %c6_i32 = arith.constant 6 : i32
    %153 = arith.index_cast %c6_i32 : i32 to index
    %c0_37 = arith.constant 0 : index
    %c0_38 = arith.constant 0 : index
    %154 = vector.load %arg0[%153, %c0_37, %c0_38] : memref<8x8x128xf32, #tpu.memory_space<vmem>>, vector<1x8x128xf32>
    %155 = vector.shape_cast %154 : vector<1x8x128xf32> to vector<8x128xf32>
    %cst_39 = arith.constant dense<0.000000e+00> : vector<8x128xf32>
    %156 = tpu.matmul %148, %0, %cst_39 {dimension_numbers = #tpu.dot_dimension_numbers<[1], [0], [0], [1], [0, 0, 1, 1], [], []>} : vector<8x32xf32>, vector<32x128xf32>, vector<8x128xf32> -> vector<8x128xf32>
    %157 = arith.addf %155, %156 : vector<8x128xf32>
    %158 = vector.extract_strided_slice %157 {offsets = [0, 0], sizes = [8, 96], strides = [1, 1]} : vector<8x128xf32> to vector<8x96xf32>
    %159 = arith.negf %158 : vector<8x96xf32>
    %160 = math.exp %159 : vector<8x96xf32>
    %cst_40 = arith.constant 1.000000e+00 : f32
    %161 = vector.broadcast %cst_40 : f32 to vector<8x96xf32>
    %162 = arith.addf %161, %160 : vector<8x96xf32>
    %163 = arith.divf %161, %162 : vector<8x96xf32>
    %164 = vector.extract_strided_slice %157 {offsets = [0, 96], sizes = [8, 32], strides = [1, 1]} : vector<8x128xf32> to vector<8x32xf32>
    %165 = math.tanh %164 : vector<8x32xf32>
    %166 = vector.extract_strided_slice %163 {offsets = [0, 0], sizes = [8, 32], strides = [1, 1]} : vector<8x96xf32> to vector<8x32xf32>
    %167 = vector.extract_strided_slice %163 {offsets = [0, 32], sizes = [8, 32], strides = [1, 1]} : vector<8x96xf32> to vector<8x32xf32>
    %168 = vector.extract_strided_slice %163 {offsets = [0, 64], sizes = [8, 32], strides = [1, 1]} : vector<8x96xf32> to vector<8x32xf32>
    %169 = arith.mulf %167, %146 : vector<8x32xf32>
    %170 = arith.mulf %166, %165 : vector<8x32xf32>
    %171 = arith.addf %169, %170 : vector<8x32xf32>
    %172 = math.tanh %171 : vector<8x32xf32>
    %173 = arith.mulf %168, %172 : vector<8x32xf32>
    %c8_i32_41 = arith.constant 8 : i32
    %174 = arith.muli %c6_i32, %c8_i32_41 : i32
    %175 = tpu.assume_multiple %174, 8 : i32
    %176 = arith.index_cast %175 : i32 to index
    %c0_42 = arith.constant 0 : index
    %177 = vector.load %arg8[%176, %c0_42] : memref<64x32xf32, #tpu.memory_space<vmem>>, vector<8x32xf32>
    tpu.vector_store %arg8[%176, %c0_42], %173 {strides = array<i32>} : memref<64x32xf32, #tpu.memory_space<vmem>>, vector<8x32xf32>,
    %c7_i32 = arith.constant 7 : i32
    %178 = arith.index_cast %c7_i32 : i32 to index
    %c0_43 = arith.constant 0 : index
    %c0_44 = arith.constant 0 : index
    %179 = vector.load %arg0[%178, %c0_43, %c0_44] : memref<8x8x128xf32, #tpu.memory_space<vmem>>, vector<1x8x128xf32>
    %180 = vector.shape_cast %179 : vector<1x8x128xf32> to vector<8x128xf32>
    %cst_45 = arith.constant dense<0.000000e+00> : vector<8x128xf32>
    %181 = tpu.matmul %173, %0, %cst_45 {dimension_numbers = #tpu.dot_dimension_numbers<[1], [0], [0], [1], [0, 0, 1, 1], [], []>} : vector<8x32xf32>, vector<32x128xf32>, vector<8x128xf32> -> vector<8x128xf32>
    %182 = arith.addf %180, %181 : vector<8x128xf32>
    %183 = vector.extract_strided_slice %182 {offsets = [0, 0], sizes = [8, 96], strides = [1, 1]} : vector<8x128xf32> to vector<8x96xf32>
    %184 = arith.negf %183 : vector<8x96xf32>
    %185 = math.exp %184 : vector<8x96xf32>
    %cst_46 = arith.constant 1.000000e+00 : f32
    %186 = vector.broadcast %cst_46 : f32 to vector<8x96xf32>
    %187 = arith.addf %186, %185 : vector<8x96xf32>
    %188 = arith.divf %186, %187 : vector<8x96xf32>
    %189 = vector.extract_strided_slice %182 {offsets = [0, 96], sizes = [8, 32], strides = [1, 1]} : vector<8x128xf32> to vector<8x32xf32>
    %190 = math.tanh %189 : vector<8x32xf32>
    %191 = vector.extract_strided_slice %188 {offsets = [0, 0], sizes = [8, 32], strides = [1, 1]} : vector<8x96xf32> to vector<8x32xf32>
    %192 = vector.extract_strided_slice %188 {offsets = [0, 32], sizes = [8, 32], strides = [1, 1]} : vector<8x96xf32> to vector<8x32xf32>
    %193 = vector.extract_strided_slice %188 {offsets = [0, 64], sizes = [8, 32], strides = [1, 1]} : vector<8x96xf32> to vector<8x32xf32>
    %194 = arith.mulf %192, %171 : vector<8x32xf32>
    %195 = arith.mulf %191, %190 : vector<8x32xf32>
    %196 = arith.addf %194, %195 : vector<8x32xf32>
    %197 = math.tanh %196 : vector<8x32xf32>
    %198 = arith.mulf %193, %197 : vector<8x32xf32>
    %c8_i32_47 = arith.constant 8 : i32
    %199 = arith.muli %c7_i32, %c8_i32_47 : i32
    %200 = tpu.assume_multiple %199, 8 : i32
    %201 = arith.index_cast %200 : i32 to index
    %c0_48 = arith.constant 0 : index
    %202 = vector.load %arg8[%201, %c0_48] : memref<64x32xf32, #tpu.memory_space<vmem>>, vector<8x32xf32>
    tpu.vector_store %arg8[%201, %c0_48], %198 {strides = array<i32>} : memref<64x32xf32, #tpu.memory_space<vmem>>, vector<8x32xf32>,
    %c8_i32_49 = arith.constant 8 : i32
    %c0_50 = arith.constant 0 : index
    %c0_51 = arith.constant 0 : index
    %203 = vector.load %arg3[%c0_50, %c0_51] : memref<32x128xf32, #tpu.memory_space<vmem>>, vector<32x128xf32>
    %c0_52 = arith.constant 0 : index
    %c0_53 = arith.constant 0 : index
    %204 = vector.load %arg4[%c0_52, %c0_53] : memref<1x128xf32, #tpu.memory_space<vmem>>, vector<1x128xf32>
    %c0_54 = arith.constant 0 : index
    %c0_55 = arith.constant 0 : index
    %205 = vector.load %arg8[%c0_54, %c0_55] : memref<64x32xf32, #tpu.memory_space<vmem>>, vector<64x32xf32>
    %cst_56 = arith.constant dense<0.000000e+00> : vector<64x128xf32>
    %206 = tpu.matmul %205, %203, %cst_56 {dimension_numbers = #tpu.dot_dimension_numbers<[1], [0], [0], [1], [0, 0, 1, 1], [], []>} : vector<64x32xf32>, vector<32x128xf32>, vector<64x128xf32> -> vector<64x128xf32>
    %207 = vector.broadcast %204 : vector<1x128xf32> to vector<64x128xf32>
    %208 = arith.addf %206, %207 : vector<64x128xf32>
    %c0_57 = arith.constant 0 : index
    %c0_58 = arith.constant 0 : index
    %209 = vector.load %arg9[%c0_57, %c0_58] : memref<64x128xf32, #tpu.memory_space<vmem>>, vector<64x128xf32>
    tpu.vector_store %arg9[%c0_57, %c0_58], %208 {strides = array<i32>} : memref<64x128xf32, #tpu.memory_space<vmem>>, vector<64x128xf32>,
    %c0_59 = arith.constant 0 : index
    %c0_60 = arith.constant 0 : index
    %210 = vector.load %arg2[%c0_59, %c0_60] : memref<32x128xf32, #tpu.memory_space<vmem>>, vector<32x128xf32>
    %cst_61 = arith.constant 0.000000e+00 : f32
    %211 = vector.broadcast %cst_61 : f32 to vector<8x32xf32>
    %cst_62 = arith.constant 0.000000e+00 : f32
    %212 = vector.broadcast %cst_62 : f32 to vector<8x32xf32>
    %c0_i32_63 = arith.constant 0 : i32
    %c8_i32_64 = arith.constant 8 : i32
    %213 = arith.muli %c0_i32_63, %c8_i32_64 : i32
    %214 = tpu.assume_multiple %213, 8 : i32
    %215 = arith.index_cast %214 : i32 to index
    %c0_65 = arith.constant 0 : index
    %216 = vector.load %arg9[%215, %c0_65] : memref<64x128xf32, #tpu.memory_space<vmem>>, vector<8x128xf32>
    %cst_66 = arith.constant dense<0.000000e+00> : vector<8x128xf32>
    %217 = tpu.matmul %211, %210, %cst_66 {dimension_numbers = #tpu.dot_dimension_numbers<[1], [0], [0], [1], [0, 0, 1, 1], [], []>} : vector<8x32xf32>, vector<32x128xf32>, vector<8x128xf32> -> vector<8x128xf32>
    %218 = arith.addf %216, %217 : vector<8x128xf32>
    %219 = vector.extract_strided_slice %218 {offsets = [0, 0], sizes = [8, 96], strides = [1, 1]} : vector<8x128xf32> to vector<8x96xf32>
    %220 = arith.negf %219 : vector<8x96xf32>
    %221 = math.exp %220 : vector<8x96xf32>
    %cst_67 = arith.constant 1.000000e+00 : f32
    %222 = vector.broadcast %cst_67 : f32 to vector<8x96xf32>
    %223 = arith.addf %222, %221 : vector<8x96xf32>
    %224 = arith.divf %222, %223 : vector<8x96xf32>
    %225 = vector.extract_strided_slice %218 {offsets = [0, 96], sizes = [8, 32], strides = [1, 1]} : vector<8x128xf32> to vector<8x32xf32>
    %226 = math.tanh %225 : vector<8x32xf32>
    %227 = vector.extract_strided_slice %224 {offsets = [0, 0], sizes = [8, 32], strides = [1, 1]} : vector<8x96xf32> to vector<8x32xf32>
    %228 = vector.extract_strided_slice %224 {offsets = [0, 32], sizes = [8, 32], strides = [1, 1]} : vector<8x96xf32> to vector<8x32xf32>
    %229 = vector.extract_strided_slice %224 {offsets = [0, 64], sizes = [8, 32], strides = [1, 1]} : vector<8x96xf32> to vector<8x32xf32>
    %230 = arith.mulf %228, %212 : vector<8x32xf32>
    %231 = arith.mulf %227, %226 : vector<8x32xf32>
    %232 = arith.addf %230, %231 : vector<8x32xf32>
    %233 = math.tanh %232 : vector<8x32xf32>
    %234 = arith.mulf %229, %233 : vector<8x32xf32>
    %c1_i32_68 = arith.constant 1 : i32
    %c8_i32_69 = arith.constant 8 : i32
    %235 = arith.muli %c1_i32_68, %c8_i32_69 : i32
    %236 = tpu.assume_multiple %235, 8 : i32
    %237 = arith.index_cast %236 : i32 to index
    %c0_70 = arith.constant 0 : index
    %238 = vector.load %arg9[%237, %c0_70] : memref<64x128xf32, #tpu.memory_space<vmem>>, vector<8x128xf32>
    %cst_71 = arith.constant dense<0.000000e+00> : vector<8x128xf32>
    %239 = tpu.matmul %234, %210, %cst_71 {dimension_numbers = #tpu.dot_dimension_numbers<[1], [0], [0], [1], [0, 0, 1, 1], [], []>} : vector<8x32xf32>, vector<32x128xf32>, vector<8x128xf32> -> vector<8x128xf32>
    %240 = arith.addf %238, %239 : vector<8x128xf32>
    %241 = vector.extract_strided_slice %240 {offsets = [0, 0], sizes = [8, 96], strides = [1, 1]} : vector<8x128xf32> to vector<8x96xf32>
    %242 = arith.negf %241 : vector<8x96xf32>
    %243 = math.exp %242 : vector<8x96xf32>
    %cst_72 = arith.constant 1.000000e+00 : f32
    %244 = vector.broadcast %cst_72 : f32 to vector<8x96xf32>
    %245 = arith.addf %244, %243 : vector<8x96xf32>
    %246 = arith.divf %244, %245 : vector<8x96xf32>
    %247 = vector.extract_strided_slice %240 {offsets = [0, 96], sizes = [8, 32], strides = [1, 1]} : vector<8x128xf32> to vector<8x32xf32>
    %248 = math.tanh %247 : vector<8x32xf32>
    %249 = vector.extract_strided_slice %246 {offsets = [0, 0], sizes = [8, 32], strides = [1, 1]} : vector<8x96xf32> to vector<8x32xf32>
    %250 = vector.extract_strided_slice %246 {offsets = [0, 32], sizes = [8, 32], strides = [1, 1]} : vector<8x96xf32> to vector<8x32xf32>
    %251 = vector.extract_strided_slice %246 {offsets = [0, 64], sizes = [8, 32], strides = [1, 1]} : vector<8x96xf32> to vector<8x32xf32>
    %252 = arith.mulf %250, %232 : vector<8x32xf32>
    %253 = arith.mulf %249, %248 : vector<8x32xf32>
    %254 = arith.addf %252, %253 : vector<8x32xf32>
    %255 = math.tanh %254 : vector<8x32xf32>
    %256 = arith.mulf %251, %255 : vector<8x32xf32>
    %c2_i32_73 = arith.constant 2 : i32
    %c8_i32_74 = arith.constant 8 : i32
    %257 = arith.muli %c2_i32_73, %c8_i32_74 : i32
    %258 = tpu.assume_multiple %257, 8 : i32
    %259 = arith.index_cast %258 : i32 to index
    %c0_75 = arith.constant 0 : index
    %260 = vector.load %arg9[%259, %c0_75] : memref<64x128xf32, #tpu.memory_space<vmem>>, vector<8x128xf32>
    %cst_76 = arith.constant dense<0.000000e+00> : vector<8x128xf32>
    %261 = tpu.matmul %256, %210, %cst_76 {dimension_numbers = #tpu.dot_dimension_numbers<[1], [0], [0], [1], [0, 0, 1, 1], [], []>} : vector<8x32xf32>, vector<32x128xf32>, vector<8x128xf32> -> vector<8x128xf32>
    %262 = arith.addf %260, %261 : vector<8x128xf32>
    %263 = vector.extract_strided_slice %262 {offsets = [0, 0], sizes = [8, 96], strides = [1, 1]} : vector<8x128xf32> to vector<8x96xf32>
    %264 = arith.negf %263 : vector<8x96xf32>
    %265 = math.exp %264 : vector<8x96xf32>
    %cst_77 = arith.constant 1.000000e+00 : f32
    %266 = vector.broadcast %cst_77 : f32 to vector<8x96xf32>
    %267 = arith.addf %266, %265 : vector<8x96xf32>
    %268 = arith.divf %266, %267 : vector<8x96xf32>
    %269 = vector.extract_strided_slice %262 {offsets = [0, 96], sizes = [8, 32], strides = [1, 1]} : vector<8x128xf32> to vector<8x32xf32>
    %270 = math.tanh %269 : vector<8x32xf32>
    %271 = vector.extract_strided_slice %268 {offsets = [0, 0], sizes = [8, 32], strides = [1, 1]} : vector<8x96xf32> to vector<8x32xf32>
    %272 = vector.extract_strided_slice %268 {offsets = [0, 32], sizes = [8, 32], strides = [1, 1]} : vector<8x96xf32> to vector<8x32xf32>
    %273 = vector.extract_strided_slice %268 {offsets = [0, 64], sizes = [8, 32], strides = [1, 1]} : vector<8x96xf32> to vector<8x32xf32>
    %274 = arith.mulf %272, %254 : vector<8x32xf32>
    %275 = arith.mulf %271, %270 : vector<8x32xf32>
    %276 = arith.addf %274, %275 : vector<8x32xf32>
    %277 = math.tanh %276 : vector<8x32xf32>
    %278 = arith.mulf %273, %277 : vector<8x32xf32>
    %c3_i32_78 = arith.constant 3 : i32
    %c8_i32_79 = arith.constant 8 : i32
    %279 = arith.muli %c3_i32_78, %c8_i32_79 : i32
    %280 = tpu.assume_multiple %279, 8 : i32
    %281 = arith.index_cast %280 : i32 to index
    %c0_80 = arith.constant 0 : index
    %282 = vector.load %arg9[%281, %c0_80] : memref<64x128xf32, #tpu.memory_space<vmem>>, vector<8x128xf32>
    %cst_81 = arith.constant dense<0.000000e+00> : vector<8x128xf32>
    %283 = tpu.matmul %278, %210, %cst_81 {dimension_numbers = #tpu.dot_dimension_numbers<[1], [0], [0], [1], [0, 0, 1, 1], [], []>} : vector<8x32xf32>, vector<32x128xf32>, vector<8x128xf32> -> vector<8x128xf32>
    %284 = arith.addf %282, %283 : vector<8x128xf32>
    %285 = vector.extract_strided_slice %284 {offsets = [0, 0], sizes = [8, 96], strides = [1, 1]} : vector<8x128xf32> to vector<8x96xf32>
    %286 = arith.negf %285 : vector<8x96xf32>
    %287 = math.exp %286 : vector<8x96xf32>
    %cst_82 = arith.constant 1.000000e+00 : f32
    %288 = vector.broadcast %cst_82 : f32 to vector<8x96xf32>
    %289 = arith.addf %288, %287 : vector<8x96xf32>
    %290 = arith.divf %288, %289 : vector<8x96xf32>
    %291 = vector.extract_strided_slice %284 {offsets = [0, 96], sizes = [8, 32], strides = [1, 1]} : vector<8x128xf32> to vector<8x32xf32>
    %292 = math.tanh %291 : vector<8x32xf32>
    %293 = vector.extract_strided_slice %290 {offsets = [0, 0], sizes = [8, 32], strides = [1, 1]} : vector<8x96xf32> to vector<8x32xf32>
    %294 = vector.extract_strided_slice %290 {offsets = [0, 32], sizes = [8, 32], strides = [1, 1]} : vector<8x96xf32> to vector<8x32xf32>
    %295 = vector.extract_strided_slice %290 {offsets = [0, 64], sizes = [8, 32], strides = [1, 1]} : vector<8x96xf32> to vector<8x32xf32>
    %296 = arith.mulf %294, %276 : vector<8x32xf32>
    %297 = arith.mulf %293, %292 : vector<8x32xf32>
    %298 = arith.addf %296, %297 : vector<8x32xf32>
    %299 = math.tanh %298 : vector<8x32xf32>
    %300 = arith.mulf %295, %299 : vector<8x32xf32>
    %c4_i32_83 = arith.constant 4 : i32
    %c8_i32_84 = arith.constant 8 : i32
    %301 = arith.muli %c4_i32_83, %c8_i32_84 : i32
    %302 = tpu.assume_multiple %301, 8 : i32
    %303 = arith.index_cast %302 : i32 to index
    %c0_85 = arith.constant 0 : index
    %304 = vector.load %arg9[%303, %c0_85] : memref<64x128xf32, #tpu.memory_space<vmem>>, vector<8x128xf32>
    %cst_86 = arith.constant dense<0.000000e+00> : vector<8x128xf32>
    %305 = tpu.matmul %300, %210, %cst_86 {dimension_numbers = #tpu.dot_dimension_numbers<[1], [0], [0], [1], [0, 0, 1, 1], [], []>} : vector<8x32xf32>, vector<32x128xf32>, vector<8x128xf32> -> vector<8x128xf32>
    %306 = arith.addf %304, %305 : vector<8x128xf32>
    %307 = vector.extract_strided_slice %306 {offsets = [0, 0], sizes = [8, 96], strides = [1, 1]} : vector<8x128xf32> to vector<8x96xf32>
    %308 = arith.negf %307 : vector<8x96xf32>
    %309 = math.exp %308 : vector<8x96xf32>
    %cst_87 = arith.constant 1.000000e+00 : f32
    %310 = vector.broadcast %cst_87 : f32 to vector<8x96xf32>
    %311 = arith.addf %310, %309 : vector<8x96xf32>
    %312 = arith.divf %310, %311 : vector<8x96xf32>
    %313 = vector.extract_strided_slice %306 {offsets = [0, 96], sizes = [8, 32], strides = [1, 1]} : vector<8x128xf32> to vector<8x32xf32>
    %314 = math.tanh %313 : vector<8x32xf32>
    %315 = vector.extract_strided_slice %312 {offsets = [0, 0], sizes = [8, 32], strides = [1, 1]} : vector<8x96xf32> to vector<8x32xf32>
    %316 = vector.extract_strided_slice %312 {offsets = [0, 32], sizes = [8, 32], strides = [1, 1]} : vector<8x96xf32> to vector<8x32xf32>
    %317 = vector.extract_strided_slice %312 {offsets = [0, 64], sizes = [8, 32], strides = [1, 1]} : vector<8x96xf32> to vector<8x32xf32>
    %318 = arith.mulf %316, %298 : vector<8x32xf32>
    %319 = arith.mulf %315, %314 : vector<8x32xf32>
    %320 = arith.addf %318, %319 : vector<8x32xf32>
    %321 = math.tanh %320 : vector<8x32xf32>
    %322 = arith.mulf %317, %321 : vector<8x32xf32>
    %c5_i32_88 = arith.constant 5 : i32
    %c8_i32_89 = arith.constant 8 : i32
    %323 = arith.muli %c5_i32_88, %c8_i32_89 : i32
    %324 = tpu.assume_multiple %323, 8 : i32
    %325 = arith.index_cast %324 : i32 to index
    %c0_90 = arith.constant 0 : index
    %326 = vector.load %arg9[%325, %c0_90] : memref<64x128xf32, #tpu.memory_space<vmem>>, vector<8x128xf32>
    %cst_91 = arith.constant dense<0.000000e+00> : vector<8x128xf32>
    %327 = tpu.matmul %322, %210, %cst_91 {dimension_numbers = #tpu.dot_dimension_numbers<[1], [0], [0], [1], [0, 0, 1, 1], [], []>} : vector<8x32xf32>, vector<32x128xf32>, vector<8x128xf32> -> vector<8x128xf32>
    %328 = arith.addf %326, %327 : vector<8x128xf32>
    %329 = vector.extract_strided_slice %328 {offsets = [0, 0], sizes = [8, 96], strides = [1, 1]} : vector<8x128xf32> to vector<8x96xf32>
    %330 = arith.negf %329 : vector<8x96xf32>
    %331 = math.exp %330 : vector<8x96xf32>
    %cst_92 = arith.constant 1.000000e+00 : f32
    %332 = vector.broadcast %cst_92 : f32 to vector<8x96xf32>
    %333 = arith.addf %332, %331 : vector<8x96xf32>
    %334 = arith.divf %332, %333 : vector<8x96xf32>
    %335 = vector.extract_strided_slice %328 {offsets = [0, 96], sizes = [8, 32], strides = [1, 1]} : vector<8x128xf32> to vector<8x32xf32>
    %336 = math.tanh %335 : vector<8x32xf32>
    %337 = vector.extract_strided_slice %334 {offsets = [0, 0], sizes = [8, 32], strides = [1, 1]} : vector<8x96xf32> to vector<8x32xf32>
    %338 = vector.extract_strided_slice %334 {offsets = [0, 32], sizes = [8, 32], strides = [1, 1]} : vector<8x96xf32> to vector<8x32xf32>
    %339 = vector.extract_strided_slice %334 {offsets = [0, 64], sizes = [8, 32], strides = [1, 1]} : vector<8x96xf32> to vector<8x32xf32>
    %340 = arith.mulf %338, %320 : vector<8x32xf32>
    %341 = arith.mulf %337, %336 : vector<8x32xf32>
    %342 = arith.addf %340, %341 : vector<8x32xf32>
    %343 = math.tanh %342 : vector<8x32xf32>
    %344 = arith.mulf %339, %343 : vector<8x32xf32>
    %c6_i32_93 = arith.constant 6 : i32
    %c8_i32_94 = arith.constant 8 : i32
    %345 = arith.muli %c6_i32_93, %c8_i32_94 : i32
    %346 = tpu.assume_multiple %345, 8 : i32
    %347 = arith.index_cast %346 : i32 to index
    %c0_95 = arith.constant 0 : index
    %348 = vector.load %arg9[%347, %c0_95] : memref<64x128xf32, #tpu.memory_space<vmem>>, vector<8x128xf32>
    %cst_96 = arith.constant dense<0.000000e+00> : vector<8x128xf32>
    %349 = tpu.matmul %344, %210, %cst_96 {dimension_numbers = #tpu.dot_dimension_numbers<[1], [0], [0], [1], [0, 0, 1, 1], [], []>} : vector<8x32xf32>, vector<32x128xf32>, vector<8x128xf32> -> vector<8x128xf32>
    %350 = arith.addf %348, %349 : vector<8x128xf32>
    %351 = vector.extract_strided_slice %350 {offsets = [0, 0], sizes = [8, 96], strides = [1, 1]} : vector<8x128xf32> to vector<8x96xf32>
    %352 = arith.negf %351 : vector<8x96xf32>
    %353 = math.exp %352 : vector<8x96xf32>
    %cst_97 = arith.constant 1.000000e+00 : f32
    %354 = vector.broadcast %cst_97 : f32 to vector<8x96xf32>
    %355 = arith.addf %354, %353 : vector<8x96xf32>
    %356 = arith.divf %354, %355 : vector<8x96xf32>
    %357 = vector.extract_strided_slice %350 {offsets = [0, 96], sizes = [8, 32], strides = [1, 1]} : vector<8x128xf32> to vector<8x32xf32>
    %358 = math.tanh %357 : vector<8x32xf32>
    %359 = vector.extract_strided_slice %356 {offsets = [0, 0], sizes = [8, 32], strides = [1, 1]} : vector<8x96xf32> to vector<8x32xf32>
    %360 = vector.extract_strided_slice %356 {offsets = [0, 32], sizes = [8, 32], strides = [1, 1]} : vector<8x96xf32> to vector<8x32xf32>
    %361 = vector.extract_strided_slice %356 {offsets = [0, 64], sizes = [8, 32], strides = [1, 1]} : vector<8x96xf32> to vector<8x32xf32>
    %362 = arith.mulf %360, %342 : vector<8x32xf32>
    %363 = arith.mulf %359, %358 : vector<8x32xf32>
    %364 = arith.addf %362, %363 : vector<8x32xf32>
    %365 = math.tanh %364 : vector<8x32xf32>
    %366 = arith.mulf %361, %365 : vector<8x32xf32>
    %c7_i32_98 = arith.constant 7 : i32
    %c8_i32_99 = arith.constant 8 : i32
    %367 = arith.muli %c7_i32_98, %c8_i32_99 : i32
    %368 = tpu.assume_multiple %367, 8 : i32
    %369 = arith.index_cast %368 : i32 to index
    %c0_100 = arith.constant 0 : index
    %370 = vector.load %arg9[%369, %c0_100] : memref<64x128xf32, #tpu.memory_space<vmem>>, vector<8x128xf32>
    %cst_101 = arith.constant dense<0.000000e+00> : vector<8x128xf32>
    %371 = tpu.matmul %366, %210, %cst_101 {dimension_numbers = #tpu.dot_dimension_numbers<[1], [0], [0], [1], [0, 0, 1, 1], [], []>} : vector<8x32xf32>, vector<32x128xf32>, vector<8x128xf32> -> vector<8x128xf32>
    %372 = arith.addf %370, %371 : vector<8x128xf32>
    %373 = vector.extract_strided_slice %372 {offsets = [0, 0], sizes = [8, 96], strides = [1, 1]} : vector<8x128xf32> to vector<8x96xf32>
    %374 = arith.negf %373 : vector<8x96xf32>
    %375 = math.exp %374 : vector<8x96xf32>
    %cst_102 = arith.constant 1.000000e+00 : f32
    %376 = vector.broadcast %cst_102 : f32 to vector<8x96xf32>
    %377 = arith.addf %376, %375 : vector<8x96xf32>
    %378 = arith.divf %376, %377 : vector<8x96xf32>
    %379 = vector.extract_strided_slice %372 {offsets = [0, 96], sizes = [8, 32], strides = [1, 1]} : vector<8x128xf32> to vector<8x32xf32>
    %380 = math.tanh %379 : vector<8x32xf32>
    %381 = vector.extract_strided_slice %378 {offsets = [0, 0], sizes = [8, 32], strides = [1, 1]} : vector<8x96xf32> to vector<8x32xf32>
    %382 = vector.extract_strided_slice %378 {offsets = [0, 32], sizes = [8, 32], strides = [1, 1]} : vector<8x96xf32> to vector<8x32xf32>
    %383 = vector.extract_strided_slice %378 {offsets = [0, 64], sizes = [8, 32], strides = [1, 1]} : vector<8x96xf32> to vector<8x32xf32>
    %384 = arith.mulf %382, %364 : vector<8x32xf32>
    %385 = arith.mulf %381, %380 : vector<8x32xf32>
    %386 = arith.addf %384, %385 : vector<8x32xf32>
    %387 = math.tanh %386 : vector<8x32xf32>
    %388 = arith.mulf %383, %387 : vector<8x32xf32>
    %c8_i32_103 = arith.constant 8 : i32
    %c0_104 = arith.constant 0 : index
    %c0_105 = arith.constant 0 : index
    %389 = vector.load %arg5[%c0_104, %c0_105] : memref<32x128xf32, #tpu.memory_space<vmem>>, vector<32x128xf32>
    %cst_106 = arith.constant dense<0.000000e+00> : vector<8x128xf32>
    %390 = tpu.matmul %388, %389, %cst_106 {dimension_numbers = #tpu.dot_dimension_numbers<[1], [0], [0], [1], [0, 0, 1, 1], [], []>} : vector<8x32xf32>, vector<32x128xf32>, vector<8x128xf32> -> vector<8x128xf32>
    %c0_107 = arith.constant 0 : index
    %c0_108 = arith.constant 0 : index
    %391 = vector.load %arg6[%c0_107, %c0_108] : memref<1x128xf32, #tpu.memory_space<vmem>>, vector<1x128xf32>
    %392 = vector.broadcast %391 : vector<1x128xf32> to vector<8x128xf32>
    %393 = arith.addf %390, %392 : vector<8x128xf32>
    %c0_109 = arith.constant 0 : index
    %c0_110 = arith.constant 0 : index
    %394 = vector.load %arg7[%c0_109, %c0_110] : memref<8x128xf32, #tpu.memory_space<vmem>>, vector<8x128xf32>
    tpu.vector_store %arg7[%c0_109, %c0_110], %393 {strides = array<i32>} : memref<8x128xf32, #tpu.memory_space<vmem>>, vector<8x128xf32>,
    return
  }
}

</mosaic_0001>

<llo_original>
// kernel: lstm_forward.1
$region0: #{lstm_forward.1}
  #allocation0 [shape = 'u32[]', space=smem, size = 0x4, offset = 0x4, fixed_abs, tag = 'smem constant byte address 0x4 - core index']
  #allocation1 [shape = 'u32[144,128]{1,0:T(1,128)}', space=vmem, size = 0x12000, scoped, tag = 'internal scratch']
  #allocation2 [shape = 'f32[64,32]{1,0:T(8,128)}', space=vmem, size = 0x8000, scoped, tag = 'scratch operand']
  #allocation3 [shape = 'f32[64,128]{1,0:T(8,128)}', space=vmem, size = 0x8000, scoped, tag = 'scratch operand']
  %s0 = inlined_call_operand.vmem [shape: f32[8,8,128], index: 0, kind: input, shape index: {}]
  %s1 = inlined_call_operand.vmem [shape: f32[32,128], index: 1, kind: input, shape index: {}]
  %s2 = inlined_call_operand.vmem [shape: f32[32,128], index: 2, kind: input, shape index: {}]
  %s3 = inlined_call_operand.vmem [shape: f32[32,128], index: 3, kind: input, shape index: {}]
  %s4 = inlined_call_operand.vmem [shape: f32[1,128], index: 4, kind: input, shape index: {}]
  %s5 = inlined_call_operand.vmem [shape: f32[32,128], index: 5, kind: input, shape index: {}]
  %s6 = inlined_call_operand.vmem [shape: f32[1,128], index: 6, kind: input, shape index: {}]
  %s7 = inlined_call_operand.vmem [shape: f32[8,128], index: 7, kind: output, shape index: {}]
  %s8 = sld [smem:[#allocation0]]
  $region38: #{lstm_forward.1} parent=0
    _
  %s10 = ssub.s32 1, %s8
  %s11 = scalar_select 0, %s10, %s8
  // Predicated region
  $region2: #{lstm_forward.1} parent=0 // pred_check
    _
  $region3: #{lstm_forward.1} parent=0 // pred_check_branch
    %13 = sbr.rel (0) target = $region5
  $region4: #{lstm_forward.1} parent=0 // pred_region
    _
  $region5: #{lstm_forward.1} parent=0 // pred_fallthru
    _
  // Predicated region
  $region6: #{lstm_forward.1} parent=0 // pred_check
    _
  $region7: #{lstm_forward.1} parent=0 // pred_check_branch
    %15 = sbr.rel (0) target = $region9
  $region8: #{lstm_forward.1} parent=0 // pred_region
    _
  $region9: #{lstm_forward.1} parent=0 // pred_fallthru
    _
  // Predicated region
  $region10: #{lstm_forward.1} parent=0 // pred_check
    _
  $region11: #{lstm_forward.1} parent=0 // pred_check_branch
    %17 = sbr.rel (0) target = $region13
  $region12: #{lstm_forward.1} parent=0 // pred_region
    _
  $region13: #{lstm_forward.1} parent=0 // pred_fallthru
    _
  // Predicated region
  $region14: #{lstm_forward.1} parent=0 // pred_check
    _
  $region15: #{lstm_forward.1} parent=0 // pred_check_branch
    %19 = sbr.rel (0) target = $region17
  $region16: #{lstm_forward.1} parent=0 // pred_region
    _
  $region17: #{lstm_forward.1} parent=0 // pred_fallthru
    _
  // Predicated region
  $region18: #{lstm_forward.1} parent=0 // pred_check
    _
  $region19: #{lstm_forward.1} parent=0 // pred_check_branch
    %21 = sbr.rel (0) target = $region21
  $region20: #{lstm_forward.1} parent=0 // pred_region
    _
  $region21: #{lstm_forward.1} parent=0 // pred_fallthru
    _
  // Predicated region
  $region22: #{lstm_forward.1} parent=0 // pred_check
    _
  $region23: #{lstm_forward.1} parent=0 // pred_check_branch
    %23 = sbr.rel (0) target = $region25
  $region24: #{lstm_forward.1} parent=0 // pred_region
    _
  $region25: #{lstm_forward.1} parent=0 // pred_fallthru
    _
  // Predicated region
  $region26: #{lstm_forward.1} parent=0 // pred_check
    _
  $region27: #{lstm_forward.1} parent=0 // pred_check_branch
    %25 = sbr.rel (0) target = $region29
  $region28: #{lstm_forward.1} parent=0 // pred_region
    _
  $region29: #{lstm_forward.1} parent=0 // pred_fallthru
    _
  %v26 = vld [vmem:[%s1] sm:$0xff]
  %v27 = vld [vmem:[%s1 + $0x8] sm:$0xff]
  %v28 = vld [vmem:[%s1 + $0x10] sm:$0xff]
  %v29 = vld [vmem:[%s1 + $0x18] sm:$0xff]
  %v30 = vld [vmem:[%s0] sm:$0xff]
  %vm31 = vcmask 261120
  %v33 = vsel %vm31, 0.0, 0
  %35 = vmatprep.subr.mxu0 0.0
  %36 = vmatpush1.msra.mxu0 0.0
  %37 = vmatprep.subr.mxu0 0.0
  %38 = vmatpush1.msra.mxu0 0.0
  %39 = vmatprep.subr.mxu0 0.0
  %40 = vmatpush1.msra.mxu0 0.0
  %41 = vmatprep.subr.mxu0 0.0
  %42 = vmatpush1.msra.mxu0 0.0
  %43 = vmatprep.subr.mxu0 0.0
  %44 = vmatpush1.msra.mxu0 0.0
  %45 = vmatprep.subr.mxu0 0.0
  %46 = vmatpush1.msra.mxu0 0.0
  %47 = vmatprep.subr.mxu0 0.0
  %48 = vmatpush1.msra.mxu0 0.0
  %49 = vmatprep.subr.mxu0 0.0
  %50 = vmatpush1.msra.mxu0 0.0
  %51 = vmatprep.subr.mxu0 0.0
  %52 = vmatpush1.msra.mxu0 0.0
  %53 = vmatprep.subr.mxu0 0.0
  %54 = vmatpush1.msra.mxu0 0.0
  %55 = vmatprep.subr.mxu0 0.0
  %56 = vmatpush1.msra.mxu0 0.0
  %57 = vmatprep.subr.mxu0 0.0
  %58 = vmatpush1.msra.mxu0 0.0
  %59 = vmatprep.subr.mxu0 0.0
  %60 = vmatpush1.msra.mxu0 %v29
  %61 = vmatprep.subr.mxu0 0.0
  %62 = vmatpush1.msra.mxu0 %v28
  %63 = vmatprep.subr.mxu0 0.0
  %64 = vmatpush1.msra.mxu0 %v27
  %65 = vmatprep.subr.mxu0 0.0
  %66 = vmatpush1.msra.mxu0 %v26
  %67 = vmatprep.subr.mxu0 0.0
  %68 = vmatpush2.msra.mxu0 0.0
  %69 = vmatprep.subr.mxu0 0.0
  %70 = vmatpush2.msra.mxu0 0.0
  %71 = vmatprep.subr.mxu0 0.0
  %72 = vmatpush2.msra.mxu0 0.0
  %73 = vmatprep.subr.mxu0 0.0
  %74 = vmatpush2.msra.mxu0 0.0
  %75 = vmatprep.subr.mxu0 0.0
  %76 = vmatpush2.msra.mxu0 0.0
  %77 = vmatprep.subr.mxu0 0.0
  %78 = vmatpush2.msra.mxu0 0.0
  %79 = vmatprep.subr.mxu0 0.0
  %80 = vmatpush2.msra.mxu0 0.0
  %81 = vmatprep.subr.mxu0 0.0
  %82 = vmatpush2.msra.mxu0 0.0
  %83 = vmatprep.subr.mxu0 0.0
  %84 = vmatpush2.msra.mxu0 0.0
  %85 = vmatprep.subr.mxu0 0.0
  %86 = vmatpush2.msra.mxu0 0.0
  %87 = vmatprep.subr.mxu0 0.0
  %88 = vmatpush2.msra.mxu0 0.0
  %89 = vmatprep.subr.mxu0 0.0
  %90 = vmatpush2.msra.mxu0 0.0
  %91 = vmatprep.subr.mxu0 0.0
  %92 = vmatpush2.msra.mxu0 0.0
  %93 = vmatprep.subr.mxu0 0.0
  %94 = vmatpush2.msra.mxu0 0.0
  %95 = vmatprep.subr.mxu0 0.0
  %96 = vmatpush2.msra.mxu0 0.0
  %97 = vmatprep.subr.mxu0 0.0
  %98 = vmatpush2.msra.mxu0 0.0
  %99 = vmatprep.mubr.f32.mxu0 0.0
  %100 = vmatmul.mubr.f32.gmra.mxu0 %v33
  %v101 = vpop.f32.mrf.mxu0
  %v102 = vadd.f32 0.0, %v101
  %v103 = vpop.f32.mrf.mxu0
  %104 = vdwg.mxu0
  %v105 = vadd.f32 %v30, %v102
  %v106 = vxor.u32 %v105, 2147483648
  %v107 = vmul.f32 %v106, 1.442695
  %v108 = vpow.pop %v107
  %v109 = vadd.f32 %v108, 1.0
  %v110 = vrcp.pop %v109
  %v111 = vmul.f32 1.0, %v110
  %v112 = vtanh.pop %v105
  %v113 = vmul.f32 %v111, 0.0
  %115 = vrot.lane.b32.xlu0 %v112, 32
  %v116 = vpop.permute.xlu0 %115
  %v118 = vmul.f32 %v111, %v116
  %120 = vrot.lane.b32.xlu0 %v118, 32
  %v121 = vpop.permute.xlu0 %120
  %v123 = vadd.f32 %v113, %v121
  %v124 = vtanh.pop %v123
  %126 = vrot.lane.b32.xlu0 %v124, 32
  %v127 = vpop.permute.xlu0 %126
  %v129 = vmul.f32 %v111, %v127
  %131 = vrot.lane.b32.xlu0 %v129, 64
  %v132 = vpop.permute.xlu0 %131
  %134 = vst.msk [vmem:[#allocation2] sm:$0xff] %vm31, %v132
  %s135 = scalar_lea.vmem %s0, 8
  %v136 = vld [vmem:[%s135] sm:$0xff]
  %v137 = vsel %vm31, %v132, 0
  %139 = vmatprep.subr.mxu0 0.0
  %140 = vmatpush1.msra.mxu0 0.0
  %141 = vmatprep.subr.mxu0 0.0
  %142 = vmatpush1.msra.mxu0 0.0
  %143 = vmatprep.subr.mxu0 0.0
  %144 = vmatpush1.msra.mxu0 0.0
  %145 = vmatprep.subr.mxu0 0.0
  %146 = vmatpush1.msra.mxu0 0.0
  %147 = vmatprep.subr.mxu0 0.0
  %148 = vmatpush1.msra.mxu0 0.0
  %149 = vmatprep.subr.mxu0 0.0
  %150 = vmatpush1.msra.mxu0 0.0
  %151 = vmatprep.subr.mxu0 0.0
  %152 = vmatpush1.msra.mxu0 0.0
  %153 = vmatprep.subr.mxu0 0.0
  %154 = vmatpush1.msra.mxu0 0.0
  %155 = vmatprep.subr.mxu0 0.0
  %156 = vmatpush1.msra.mxu0 0.0
  %157 = vmatprep.subr.mxu0 0.0
  %158 = vmatpush1.msra.mxu0 0.0
  %159 = vmatprep.subr.mxu0 0.0
  %160 = vmatpush1.msra.mxu0 0.0
  %161 = vmatprep.subr.mxu0 0.0
  %162 = vmatpush1.msra.mxu0 0.0
  %163 = vmatprep.subr.mxu0 0.0
  %164 = vmatpush1.msra.mxu0 %v29
  %165 = vmatprep.subr.mxu0 0.0
  %166 = vmatpush1.msra.mxu0 %v28
  %167 = vmatprep.subr.mxu0 0.0
  %168 = vmatpush1.msra.mxu0 %v27
  %169 = vmatprep.subr.mxu0 0.0
  %170 = vmatpush1.msra.mxu0 %v26
  %171 = vmatprep.subr.mxu0 0.0
  %172 = vmatpush2.msra.mxu0 0.0
  %173 = vmatprep.subr.mxu0 0.0
  %174 = vmatpush2.msra.mxu0 0.0
  %175 = vmatprep.subr.mxu0 0.0
  %176 = vmatpush2.msra.mxu0 0.0
  %177 = vmatprep.subr.mxu0 0.0
  %178 = vmatpush2.msra.mxu0 0.0
  %179 = vmatprep.subr.mxu0 0.0
  %180 = vmatpush2.msra.mxu0 0.0
  %181 = vmatprep.subr.mxu0 0.0
  %182 = vmatpush2.msra.mxu0 0.0
  %183 = vmatprep.subr.mxu0 0.0
  %184 = vmatpush2.msra.mxu0 0.0
  %185 = vmatprep.subr.mxu0 0.0
  %186 = vmatpush2.msra.mxu0 0.0
  %187 = vmatprep.subr.mxu0 0.0
  %188 = vmatpush2.msra.mxu0 0.0
  %189 = vmatprep.subr.mxu0 0.0
  %190 = vmatpush2.msra.mxu0 0.0
  %191 = vmatprep.subr.mxu0 0.0
  %192 = vmatpush2.msra.mxu0 0.0
  %193 = vmatprep.subr.mxu0 0.0
  %194 = vmatpush2.msra.mxu0 0.0
  %195 = vmatprep.subr.mxu0 0.0
  %196 = vmatpush2.msra.mxu0 0.0
  %197 = vmatprep.subr.mxu0 0.0
  %198 = vmatpush2.msra.mxu0 0.0
  %199 = vmatprep.subr.mxu0 0.0
  %200 = vmatpush2.msra.mxu0 0.0
  %201 = vmatprep.subr.mxu0 0.0
  %202 = vmatpush2.msra.mxu0 0.0
  %203 = vmatprep.mubr.f32.mxu0 0.0
  %204 = vmatmul.mubr.f32.gmra.mxu0 %v137
  %v205 = vpop.f32.mrf.mxu0
  %v206 = vadd.f32 0.0, %v205
  %v207 = vpop.f32.mrf.mxu0
  %208 = vdwg.mxu0
  %v209 = vadd.f32 %v136, %v206
  %v210 = vxor.u32 %v209, 2147483648
  %v211 = vmul.f32 %v210, 1.442695
  %v212 = vpow.pop %v211
  %v213 = vadd.f32 %v212, 1.0
  %v214 = vrcp.pop %v213
  %v215 = vmul.f32 1.0, %v214
  %v216 = vtanh.pop %v209
  %v217 = vmul.f32 %v215, %v123
  %219 = vrot.lane.b32.xlu0 %v216, 32
  %v220 = vpop.permute.xlu0 %219
  %v222 = vmul.f32 %v215, %v220
  %224 = vrot.lane.b32.xlu0 %v222, 32
  %v225 = vpop.permute.xlu0 %224
  %v227 = vadd.f32 %v217, %v225
  %v228 = vtanh.pop %v227
  %230 = vrot.lane.b32.xlu0 %v228, 32
  %v231 = vpop.permute.xlu0 %230
  %v233 = vmul.f32 %v215, %v231
  %235 = vrot.lane.b32.xlu0 %v233, 64
  %v236 = vpop.permute.xlu0 %235
  %s238 = scalar_lea.vmem [#allocation2], 8
  %239 = vst.msk [vmem:[%s238] sm:$0xff] %vm31, %v236
  %s240 = scalar_lea.vmem %s0, 16
  %v241 = vld [vmem:[%s240] sm:$0xff]
  %v242 = vsel %vm31, %v236, 0
  %244 = vmatprep.subr.mxu0 0.0
  %245 = vmatpush1.msra.mxu0 0.0
  %246 = vmatprep.subr.mxu0 0.0
  %247 = vmatpush1.msra.mxu0 0.0
  %248 = vmatprep.subr.mxu0 0.0
  %249 = vmatpush1.msra.mxu0 0.0
  %250 = vmatprep.subr.mxu0 0.0
  %251 = vmatpush1.msra.mxu0 0.0
  %252 = vmatprep.subr.mxu0 0.0
  %253 = vmatpush1.msra.mxu0 0.0
  %254 = vmatprep.subr.mxu0 0.0
  %255 = vmatpush1.msra.mxu0 0.0
  %256 = vmatprep.subr.mxu0 0.0
  %257 = vmatpush1.msra.mxu0 0.0
  %258 = vmatprep.subr.mxu0 0.0
  %259 = vmatpush1.msra.mxu0 0.0
  %260 = vmatprep.subr.mxu0 0.0
  %261 = vmatpush1.msra.mxu0 0.0
  %262 = vmatprep.subr.mxu0 0.0
  %263 = vmatpush1.msra.mxu0 0.0
  %264 = vmatprep.subr.mxu0 0.0
  %265 = vmatpush1.msra.mxu0 0.0
  %266 = vmatprep.subr.mxu0 0.0
  %267 = vmatpush1.msra.mxu0 0.0
  %268 = vmatprep.subr.mxu0 0.0
  %269 = vmatpush1.msra.mxu0 %v29
  %270 = vmatprep.subr.mxu0 0.0
  %271 = vmatpush1.msra.mxu0 %v28
  %272 = vmatprep.subr.mxu0 0.0
  %273 = vmatpush1.msra.mxu0 %v27
  %274 = vmatprep.subr.mxu0 0.0
  %275 = vmatpush1.msra.mxu0 %v26
  %276 = vmatprep.subr.mxu0 0.0
  %277 = vmatpush2.msra.mxu0 0.0
  %278 = vmatprep.subr.mxu0 0.0
  %279 = vmatpush2.msra.mxu0 0.0
  %280 = vmatprep.subr.mxu0 0.0
  %281 = vmatpush2.msra.mxu0 0.0
  %282 = vmatprep.subr.mxu0 0.0
  %283 = vmatpush2.msra.mxu0 0.0
  %284 = vmatprep.subr.mxu0 0.0
  %285 = vmatpush2.msra.mxu0 0.0
  %286 = vmatprep.subr.mxu0 0.0
  %287 = vmatpush2.msra.mxu0 0.0
  %288 = vmatprep.subr.mxu0 0.0
  %289 = vmatpush2.msra.mxu0 0.0
  %290 = vmatprep.subr.mxu0 0.0
  %291 = vmatpush2.msra.mxu0 0.0
  %292 = vmatprep.subr.mxu0 0.0
  %293 = vmatpush2.msra.mxu0 0.0
  %294 = vmatprep.subr.mxu0 0.0
  %295 = vmatpush2.msra.mxu0 0.0
  %296 = vmatprep.subr.mxu0 0.0
  %297 = vmatpush2.msra.mxu0 0.0
  %298 = vmatprep.subr.mxu0 0.0
  %299 = vmatpush2.msra.mxu0 0.0
  %300 = vmatprep.subr.mxu0 0.0
  %301 = vmatpush2.msra.mxu0 0.0
  %302 = vmatprep.subr.mxu0 0.0
  %303 = vmatpush2.msra.mxu0 0.0
  %304 = vmatprep.subr.mxu0 0.0
  %305 = vmatpush2.msra.mxu0 0.0
  %306 = vmatprep.subr.mxu0 0.0
  %307 = vmatpush2.msra.mxu0 0.0
  %308 = vmatprep.mubr.f32.mxu0 0.0
  %309 = vmatmul.mubr.f32.gmra.mxu0 %v242
  %v310 = vpop.f32.mrf.mxu0
  %v311 = vadd.f32 0.0, %v310
  %v312 = vpop.f32.mrf.mxu0
  %313 = vdwg.mxu0
  %v314 = vadd.f32 %v241, %v311
  %v315 = vxor.u32 %v314, 2147483648
  %v316 = vmul.f32 %v315, 1.442695
  %v317 = vpow.pop %v316
  %v318 = vadd.f32 %v317, 1.0
  %v319 = vrcp.pop %v318
  %v320 = vmul.f32 1.0, %v319
  %v321 = vtanh.pop %v314
  %v322 = vmul.f32 %v320, %v227
  %324 = vrot.lane.b32.xlu0 %v321, 32
  %v325 = vpop.permute.xlu0 %324
  %v327 = vmul.f32 %v320, %v325
  %329 = vrot.lane.b32.xlu0 %v327, 32
  %v330 = vpop.permute.xlu0 %329
  %v332 = vadd.f32 %v322, %v330
  %v333 = vtanh.pop %v332
  %335 = vrot.lane.b32.xlu0 %v333, 32
  %v336 = vpop.permute.xlu0 %335
  %v338 = vmul.f32 %v320, %v336
  %340 = vrot.lane.b32.xlu0 %v338, 64
  %v341 = vpop.permute.xlu0 %340
  %s343 = scalar_lea.vmem [#allocation2], 16
  %344 = vst.msk [vmem:[%s343] sm:$0xff] %vm31, %v341
  %s345 = scalar_lea.vmem %s0, 24
  %v346 = vld [vmem:[%s345] sm:$0xff]
  %v347 = vsel %vm31, %v341, 0
  %349 = vmatprep.subr.mxu0 0.0
  %350 = vmatpush1.msra.mxu0 0.0
  %351 = vmatprep.subr.mxu0 0.0
  %352 = vmatpush1.msra.mxu0 0.0
  %353 = vmatprep.subr.mxu0 0.0
  %354 = vmatpush1.msra.mxu0 0.0
  %355 = vmatprep.subr.mxu0 0.0
  %356 = vmatpush1.msra.mxu0 0.0
  %357 = vmatprep.subr.mxu0 0.0
  %358 = vmatpush1.msra.mxu0 0.0
  %359 = vmatprep.subr.mxu0 0.0
  %360 = vmatpush1.msra.mxu0 0.0
  %361 = vmatprep.subr.mxu0 0.0
  %362 = vmatpush1.msra.mxu0 0.0
  %363 = vmatprep.subr.mxu0 0.0
  %364 = vmatpush1.msra.mxu0 0.0
  %365 = vmatprep.subr.mxu0 0.0
  %366 = vmatpush1.msra.mxu0 0.0
  %367 = vmatprep.subr.mxu0 0.0
  %368 = vmatpush1.msra.mxu0 0.0
  %369 = vmatprep.subr.mxu0 0.0
  %370 = vmatpush1.msra.mxu0 0.0
  %371 = vmatprep.subr.mxu0 0.0
  %372 = vmatpush1.msra.mxu0 0.0
  %373 = vmatprep.subr.mxu0 0.0
  %374 = vmatpush1.msra.mxu0 %v29
  %375 = vmatprep.subr.mxu0 0.0
  %376 = vmatpush1.msra.mxu0 %v28
  %377 = vmatprep.subr.mxu0 0.0
  %378 = vmatpush1.msra.mxu0 %v27
  %379 = vmatprep.subr.mxu0 0.0
  %380 = vmatpush1.msra.mxu0 %v26
  %381 = vmatprep.subr.mxu0 0.0
  %382 = vmatpush2.msra.mxu0 0.0
  %383 = vmatprep.subr.mxu0 0.0
  %384 = vmatpush2.msra.mxu0 0.0
  %385 = vmatprep.subr.mxu0 0.0
  %386 = vmatpush2.msra.mxu0 0.0
  %387 = vmatprep.subr.mxu0 0.0
  %388 = vmatpush2.msra.mxu0 0.0
  %389 = vmatprep.subr.mxu0 0.0
  %390 = vmatpush2.msra.mxu0 0.0
  %391 = vmatprep.subr.mxu0 0.0
  %392 = vmatpush2.msra.mxu0 0.0
  %393 = vmatprep.subr.mxu0 0.0
  %394 = vmatpush2.msra.mxu0 0.0
  %395 = vmatprep.subr.mxu0 0.0
  %396 = vmatpush2.msra.mxu0 0.0
  %397 = vmatprep.subr.mxu0 0.0
  %398 = vmatpush2.msra.mxu0 0.0
  %399 = vmatprep.subr.mxu0 0.0
  %400 = vmatpush2.msra.mxu0 0.0
  %401 = vmatprep.subr.mxu0 0.0
  %402 = vmatpush2.msra.mxu0 0.0
  %403 = vmatprep.subr.mxu0 0.0
  %404 = vmatpush2.msra.mxu0 0.0
  %405 = vmatprep.subr.mxu0 0.0
  %406 = vmatpush2.msra.mxu0 0.0
  %407 = vmatprep.subr.mxu0 0.0
  %408 = vmatpush2.msra.mxu0 0.0
  %409 = vmatprep.subr.mxu0 0.0
  %410 = vmatpush2.msra.mxu0 0.0
  %411 = vmatprep.subr.mxu0 0.0
  %412 = vmatpush2.msra.mxu0 0.0
  %413 = vmatprep.mubr.f32.mxu0 0.0
  %414 = vmatmul.mubr.f32.gmra.mxu0 %v347
  %v415 = vpop.f32.mrf.mxu0
  %v416 = vadd.f32 0.0, %v415
  %v417 = vpop.f32.mrf.mxu0
  %418 = vdwg.mxu0
  %v419 = vadd.f32 %v346, %v416
  %v420 = vxor.u32 %v419, 2147483648
  %v421 = vmul.f32 %v420, 1.442695
  %v422 = vpow.pop %v421
  %v423 = vadd.f32 %v422, 1.0
  %v424 = vrcp.pop %v423
  %v425 = vmul.f32 1.0, %v424
  %v426 = vtanh.pop %v419
  %v427 = vmul.f32 %v425, %v332
  %429 = vrot.lane.b32.xlu0 %v426, 32
  %v430 = vpop.permute.xlu0 %429
  %v432 = vmul.f32 %v425, %v430
  %434 = vrot.lane.b32.xlu0 %v432, 32
  %v435 = vpop.permute.xlu0 %434
  %v437 = vadd.f32 %v427, %v435
  %v438 = vtanh.pop %v437
  %440 = vrot.lane.b32.xlu0 %v438, 32
  %v441 = vpop.permute.xlu0 %440
  %v443 = vmul.f32 %v425, %v441
  %445 = vrot.lane.b32.xlu0 %v443, 64
  %v446 = vpop.permute.xlu0 %445
  %s448 = scalar_lea.vmem [#allocation2], 24
  %449 = vst.msk [vmem:[%s448] sm:$0xff] %vm31, %v446
  %s450 = scalar_lea.vmem %s0, 32
  %v451 = vld [vmem:[%s450] sm:$0xff]
  %v452 = vsel %vm31, %v446, 0
  %454 = vmatprep.subr.mxu0 0.0
  %455 = vmatpush1.msra.mxu0 0.0
  %456 = vmatprep.subr.mxu0 0.0
  %457 = vmatpush1.msra.mxu0 0.0
  %458 = vmatprep.subr.mxu0 0.0
  %459 = vmatpush1.msra.mxu0 0.0
  %460 = vmatprep.subr.mxu0 0.0
  %461 = vmatpush1.msra.mxu0 0.0
  %462 = vmatprep.subr.mxu0 0.0
  %463 = vmatpush1.msra.mxu0 0.0
  %464 = vmatprep.subr.mxu0 0.0
  %465 = vmatpush1.msra.mxu0 0.0
  %466 = vmatprep.subr.mxu0 0.0
  %467 = vmatpush1.msra.mxu0 0.0
  %468 = vmatprep.subr.mxu0 0.0
  %469 = vmatpush1.msra.mxu0 0.0
  %470 = vmatprep.subr.mxu0 0.0
  %471 = vmatpush1.msra.mxu0 0.0
  %472 = vmatprep.subr.mxu0 0.0
  %473 = vmatpush1.msra.mxu0 0.0
  %474 = vmatprep.subr.mxu0 0.0
  %475 = vmatpush1.msra.mxu0 0.0
  %476 = vmatprep.subr.mxu0 0.0
  %477 = vmatpush1.msra.mxu0 0.0
  %478 = vmatprep.subr.mxu0 0.0
  %479 = vmatpush1.msra.mxu0 %v29
  %480 = vmatprep.subr.mxu0 0.0
  %481 = vmatpush1.msra.mxu0 %v28
  %482 = vmatprep.subr.mxu0 0.0
  %483 = vmatpush1.msra.mxu0 %v27
  %484 = vmatprep.subr.mxu0 0.0
  %485 = vmatpush1.msra.mxu0 %v26
  %486 = vmatprep.subr.mxu0 0.0
  %487 = vmatpush2.msra.mxu0 0.0
  %488 = vmatprep.subr.mxu0 0.0
  %489 = vmatpush2.msra.mxu0 0.0
  %490 = vmatprep.subr.mxu0 0.0
  %491 = vmatpush2.msra.mxu0 0.0
  %492 = vmatprep.subr.mxu0 0.0
  %493 = vmatpush2.msra.mxu0 0.0
  %494 = vmatprep.subr.mxu0 0.0
  %495 = vmatpush2.msra.mxu0 0.0
  %496 = vmatprep.subr.mxu0 0.0
  %497 = vmatpush2.msra.mxu0 0.0
  %498 = vmatprep.subr.mxu0 0.0
  %499 = vmatpush2.msra.mxu0 0.0
  %500 = vmatprep.subr.mxu0 0.0
  %501 = vmatpush2.msra.mxu0 0.0
  %502 = vmatprep.subr.mxu0 0.0
  %503 = vmatpush2.msra.mxu0 0.0
  %504 = vmatprep.subr.mxu0 0.0
  %505 = vmatpush2.msra.mxu0 0.0
  %506 = vmatprep.subr.mxu0 0.0
  %507 = vmatpush2.msra.mxu0 0.0
  %508 = vmatprep.subr.mxu0 0.0
  %509 = vmatpush2.msra.mxu0 0.0
  %510 = vmatprep.subr.mxu0 0.0
  %511 = vmatpush2.msra.mxu0 0.0
  %512 = vmatprep.subr.mxu0 0.0
  %513 = vmatpush2.msra.mxu0 0.0
  %514 = vmatprep.subr.mxu0 0.0
  %515 = vmatpush2.msra.mxu0 0.0
  %516 = vmatprep.subr.mxu0 0.0
  %517 = vmatpush2.msra.mxu0 0.0
  %518 = vmatprep.mubr.f32.mxu0 0.0
  %519 = vmatmul.mubr.f32.gmra.mxu0 %v452
  %v520 = vpop.f32.mrf.mxu0
  %v521 = vadd.f32 0.0, %v520
  %v522 = vpop.f32.mrf.mxu0
  %523 = vdwg.mxu0
  %v524 = vadd.f32 %v451, %v521
  %v525 = vxor.u32 %v524, 2147483648
  %v526 = vmul.f32 %v525, 1.442695
  %v527 = vpow.pop %v526
  %v528 = vadd.f32 %v527, 1.0
  %v529 = vrcp.pop %v528
  %v530 = vmul.f32 1.0, %v529
  %v531 = vtanh.pop %v524
  %v532 = vmul.f32 %v530, %v437
  %534 = vrot.lane.b32.xlu0 %v531, 32
  %v535 = vpop.permute.xlu0 %534
  %v537 = vmul.f32 %v530, %v535
  %539 = vrot.lane.b32.xlu0 %v537, 32
  %v540 = vpop.permute.xlu0 %539
  %v542 = vadd.f32 %v532, %v540
  %v543 = vtanh.pop %v542
  %545 = vrot.lane.b32.xlu0 %v543, 32
  %v546 = vpop.permute.xlu0 %545
  %v548 = vmul.f32 %v530, %v546
  %550 = vrot.lane.b32.xlu0 %v548, 64
  %v551 = vpop.permute.xlu0 %550
  %s553 = scalar_lea.vmem [#allocation2], 32
  %554 = vst.msk [vmem:[%s553] sm:$0xff] %vm31, %v551
  %s555 = scalar_lea.vmem %s0, 40
  %v556 = vld [vmem:[%s555] sm:$0xff]
  %v557 = vsel %vm31, %v551, 0
  %559 = vmatprep.subr.mxu0 0.0
  %560 = vmatpush1.msra.mxu0 0.0
  %561 = vmatprep.subr.mxu0 0.0
  %562 = vmatpush1.msra.mxu0 0.0
  %563 = vmatprep.subr.mxu0 0.0
  %564 = vmatpush1.msra.mxu0 0.0
  %565 = vmatprep.subr.mxu0 0.0
  %566 = vmatpush1.msra.mxu0 0.0
  %567 = vmatprep.subr.mxu0 0.0
  %568 = vmatpush1.msra.mxu0 0.0
  %569 = vmatprep.subr.mxu0 0.0
  %570 = vmatpush1.msra.mxu0 0.0
  %571 = vmatprep.subr.mxu0 0.0
  %572 = vmatpush1.msra.mxu0 0.0
  %573 = vmatprep.subr.mxu0 0.0
  %574 = vmatpush1.msra.mxu0 0.0
  %575 = vmatprep.subr.mxu0 0.0
  %576 = vmatpush1.msra.mxu0 0.0
  %577 = vmatprep.subr.mxu0 0.0
  %578 = vmatpush1.msra.mxu0 0.0
  %579 = vmatprep.subr.mxu0 0.0
  %580 = vmatpush1.msra.mxu0 0.0
  %581 = vmatprep.subr.mxu0 0.0
  %582 = vmatpush1.msra.mxu0 0.0
  %583 = vmatprep.subr.mxu0 0.0
  %584 = vmatpush1.msra.mxu0 %v29
  %585 = vmatprep.subr.mxu0 0.0
  %586 = vmatpush1.msra.mxu0 %v28
  %587 = vmatprep.subr.mxu0 0.0
  %588 = vmatpush1.msra.mxu0 %v27
  %589 = vmatprep.subr.mxu0 0.0
  %590 = vmatpush1.msra.mxu0 %v26
  %591 = vmatprep.subr.mxu0 0.0
  %592 = vmatpush2.msra.mxu0 0.0
  %593 = vmatprep.subr.mxu0 0.0
  %594 = vmatpush2.msra.mxu0 0.0
  %595 = vmatprep.subr.mxu0 0.0
  %596 = vmatpush2.msra.mxu0 0.0
  %597 = vmatprep.subr.mxu0 0.0
  %598 = vmatpush2.msra.mxu0 0.0
  %599 = vmatprep.subr.mxu0 0.0
  %600 = vmatpush2.msra.mxu0 0.0
  %601 = vmatprep.subr.mxu0 0.0
  %602 = vmatpush2.msra.mxu0 0.0
  %603 = vmatprep.subr.mxu0 0.0
  %604 = vmatpush2.msra.mxu0 0.0
  %605 = vmatprep.subr.mxu0 0.0
  %606 = vmatpush2.msra.mxu0 0.0
  %607 = vmatprep.subr.mxu0 0.0
  %608 = vmatpush2.msra.mxu0 0.0
  %609 = vmatprep.subr.mxu0 0.0
  %610 = vmatpush2.msra.mxu0 0.0
  %611 = vmatprep.subr.mxu0 0.0
  %612 = vmatpush2.msra.mxu0 0.0
  %613 = vmatprep.subr.mxu0 0.0
  %614 = vmatpush2.msra.mxu0 0.0
  %615 = vmatprep.subr.mxu0 0.0
  %616 = vmatpush2.msra.mxu0 0.0
  %617 = vmatprep.subr.mxu0 0.0
  %618 = vmatpush2.msra.mxu0 0.0
  %619 = vmatprep.subr.mxu0 0.0
  %620 = vmatpush2.msra.mxu0 0.0
  %621 = vmatprep.subr.mxu0 0.0
  %622 = vmatpush2.msra.mxu0 0.0
  %623 = vmatprep.mubr.f32.mxu0 0.0
  %624 = vmatmul.mubr.f32.gmra.mxu0 %v557
  %v625 = vpop.f32.mrf.mxu0
  %v626 = vadd.f32 0.0, %v625
  %v627 = vpop.f32.mrf.mxu0
  %628 = vdwg.mxu0
  %v629 = vadd.f32 %v556, %v626
  %v630 = vxor.u32 %v629, 2147483648
  %v631 = vmul.f32 %v630, 1.442695
  %v632 = vpow.pop %v631
  %v633 = vadd.f32 %v632, 1.0
  %v634 = vrcp.pop %v633
  %v635 = vmul.f32 1.0, %v634
  %v636 = vtanh.pop %v629
  %v637 = vmul.f32 %v635, %v542
  %639 = vrot.lane.b32.xlu0 %v636, 32
  %v640 = vpop.permute.xlu0 %639
  %v642 = vmul.f32 %v635, %v640
  %644 = vrot.lane.b32.xlu0 %v642, 32
  %v645 = vpop.permute.xlu0 %644
  %v647 = vadd.f32 %v637, %v645
  %v648 = vtanh.pop %v647
  %650 = vrot.lane.b32.xlu0 %v648, 32
  %v651 = vpop.permute.xlu0 %650
  %v653 = vmul.f32 %v635, %v651
  %655 = vrot.lane.b32.xlu0 %v653, 64
  %v656 = vpop.permute.xlu0 %655
  %s658 = scalar_lea.vmem [#allocation2], 40
  %659 = vst.msk [vmem:[%s658] sm:$0xff] %vm31, %v656
  %s660 = scalar_lea.vmem %s0, 48
  %v661 = vld [vmem:[%s660] sm:$0xff]
  %v662 = vsel %vm31, %v656, 0
  %664 = vmatprep.subr.mxu0 0.0
  %665 = vmatpush1.msra.mxu0 0.0
  %666 = vmatprep.subr.mxu0 0.0
  %667 = vmatpush1.msra.mxu0 0.0
  %668 = vmatprep.subr.mxu0 0.0
  %669 = vmatpush1.msra.mxu0 0.0
  %670 = vmatprep.subr.mxu0 0.0
  %671 = vmatpush1.msra.mxu0 0.0
  %672 = vmatprep.subr.mxu0 0.0
  %673 = vmatpush1.msra.mxu0 0.0
  %674 = vmatprep.subr.mxu0 0.0
  %675 = vmatpush1.msra.mxu0 0.0
  %676 = vmatprep.subr.mxu0 0.0
  %677 = vmatpush1.msra.mxu0 0.0
  %678 = vmatprep.subr.mxu0 0.0
  %679 = vmatpush1.msra.mxu0 0.0
  %680 = vmatprep.subr.mxu0 0.0
  %681 = vmatpush1.msra.mxu0 0.0
  %682 = vmatprep.subr.mxu0 0.0
  %683 = vmatpush1.msra.mxu0 0.0
  %684 = vmatprep.subr.mxu0 0.0
  %685 = vmatpush1.msra.mxu0 0.0
  %686 = vmatprep.subr.mxu0 0.0
  %687 = vmatpush1.msra.mxu0 0.0
  %688 = vmatprep.subr.mxu0 0.0
  %689 = vmatpush1.msra.mxu0 %v29
  %690 = vmatprep.subr.mxu0 0.0
  %691 = vmatpush1.msra.mxu0 %v28
  %692 = vmatprep.subr.mxu0 0.0
  %693 = vmatpush1.msra.mxu0 %v27
  %694 = vmatprep.subr.mxu0 0.0
  %695 = vmatpush1.msra.mxu0 %v26
  %696 = vmatprep.subr.mxu0 0.0
  %697 = vmatpush2.msra.mxu0 0.0
  %698 = vmatprep.subr.mxu0 0.0
  %699 = vmatpush2.msra.mxu0 0.0
  %700 = vmatprep.subr.mxu0 0.0
  %701 = vmatpush2.msra.mxu0 0.0
  %702 = vmatprep.subr.mxu0 0.0
  %703 = vmatpush2.msra.mxu0 0.0
  %704 = vmatprep.subr.mxu0 0.0
  %705 = vmatpush2.msra.mxu0 0.0
  %706 = vmatprep.subr.mxu0 0.0
  %707 = vmatpush2.msra.mxu0 0.0
  %708 = vmatprep.subr.mxu0 0.0
  %709 = vmatpush2.msra.mxu0 0.0
  %710 = vmatprep.subr.mxu0 0.0
  %711 = vmatpush2.msra.mxu0 0.0
  %712 = vmatprep.subr.mxu0 0.0
  %713 = vmatpush2.msra.mxu0 0.0
  %714 = vmatprep.subr.mxu0 0.0
  %715 = vmatpush2.msra.mxu0 0.0
  %716 = vmatprep.subr.mxu0 0.0
  %717 = vmatpush2.msra.mxu0 0.0
  %718 = vmatprep.subr.mxu0 0.0
  %719 = vmatpush2.msra.mxu0 0.0
  %720 = vmatprep.subr.mxu0 0.0
  %721 = vmatpush2.msra.mxu0 0.0
  %722 = vmatprep.subr.mxu0 0.0
  %723 = vmatpush2.msra.mxu0 0.0
  %724 = vmatprep.subr.mxu0 0.0
  %725 = vmatpush2.msra.mxu0 0.0
  %726 = vmatprep.subr.mxu0 0.0
  %727 = vmatpush2.msra.mxu0 0.0
  %728 = vmatprep.mubr.f32.mxu0 0.0
  %729 = vmatmul.mubr.f32.gmra.mxu0 %v662
  %v730 = vpop.f32.mrf.mxu0
  %v731 = vadd.f32 0.0, %v730
  %v732 = vpop.f32.mrf.mxu0
  %733 = vdwg.mxu0
  %v734 = vadd.f32 %v661, %v731
  %v735 = vxor.u32 %v734, 2147483648
  %v736 = vmul.f32 %v735, 1.442695
  %v737 = vpow.pop %v736
  %v738 = vadd.f32 %v737, 1.0
  %v739 = vrcp.pop %v738
  %v740 = vmul.f32 1.0, %v739
  %v741 = vtanh.pop %v734
  %v742 = vmul.f32 %v740, %v647
  %744 = vrot.lane.b32.xlu0 %v741, 32
  %v745 = vpop.permute.xlu0 %744
  %v747 = vmul.f32 %v740, %v745
  %749 = vrot.lane.b32.xlu0 %v747, 32
  %v750 = vpop.permute.xlu0 %749
  %v752 = vadd.f32 %v742, %v750
  %v753 = vtanh.pop %v752
  %755 = vrot.lane.b32.xlu0 %v753, 32
  %v756 = vpop.permute.xlu0 %755
  %v758 = vmul.f32 %v740, %v756
  %760 = vrot.lane.b32.xlu0 %v758, 64
  %v761 = vpop.permute.xlu0 %760
  %s763 = scalar_lea.vmem [#allocation2], 48
  %764 = vst.msk [vmem:[%s763] sm:$0xff] %vm31, %v761
  %s765 = scalar_lea.vmem %s0, 56
  %v766 = vld [vmem:[%s765] sm:$0xff]
  %v767 = vsel %vm31, %v761, 0
  %769 = vmatprep.subr.mxu0 0.0
  %770 = vmatpush1.msra.mxu0 0.0
  %771 = vmatprep.subr.mxu0 0.0
  %772 = vmatpush1.msra.mxu0 0.0
  %773 = vmatprep.subr.mxu0 0.0
  %774 = vmatpush1.msra.mxu0 0.0
  %775 = vmatprep.subr.mxu0 0.0
  %776 = vmatpush1.msra.mxu0 0.0
  %777 = vmatprep.subr.mxu0 0.0
  %778 = vmatpush1.msra.mxu0 0.0
  %779 = vmatprep.subr.mxu0 0.0
  %780 = vmatpush1.msra.mxu0 0.0
  %781 = vmatprep.subr.mxu0 0.0
  %782 = vmatpush1.msra.mxu0 0.0
  %783 = vmatprep.subr.mxu0 0.0
  %784 = vmatpush1.msra.mxu0 0.0
  %785 = vmatprep.subr.mxu0 0.0
  %786 = vmatpush1.msra.mxu0 0.0
  %787 = vmatprep.subr.mxu0 0.0
  %788 = vmatpush1.msra.mxu0 0.0
  %789 = vmatprep.subr.mxu0 0.0
  %790 = vmatpush1.msra.mxu0 0.0
  %791 = vmatprep.subr.mxu0 0.0
  %792 = vmatpush1.msra.mxu0 0.0
  %793 = vmatprep.subr.mxu0 0.0
  %794 = vmatpush1.msra.mxu0 %v29
  %795 = vmatprep.subr.mxu0 0.0
  %796 = vmatpush1.msra.mxu0 %v28
  %797 = vmatprep.subr.mxu0 0.0
  %798 = vmatpush1.msra.mxu0 %v27
  %799 = vmatprep.subr.mxu0 0.0
  %800 = vmatpush1.msra.mxu0 %v26
  %801 = vmatprep.subr.mxu0 0.0
  %802 = vmatpush2.msra.mxu0 0.0
  %803 = vmatprep.subr.mxu0 0.0
  %804 = vmatpush2.msra.mxu0 0.0
  %805 = vmatprep.subr.mxu0 0.0
  %806 = vmatpush2.msra.mxu0 0.0
  %807 = vmatprep.subr.mxu0 0.0
  %808 = vmatpush2.msra.mxu0 0.0
  %809 = vmatprep.subr.mxu0 0.0
  %810 = vmatpush2.msra.mxu0 0.0
  %811 = vmatprep.subr.mxu0 0.0
  %812 = vmatpush2.msra.mxu0 0.0
  %813 = vmatprep.subr.mxu0 0.0
  %814 = vmatpush2.msra.mxu0 0.0
  %815 = vmatprep.subr.mxu0 0.0
  %816 = vmatpush2.msra.mxu0 0.0
  %817 = vmatprep.subr.mxu0 0.0
  %818 = vmatpush2.msra.mxu0 0.0
  %819 = vmatprep.subr.mxu0 0.0
  %820 = vmatpush2.msra.mxu0 0.0
  %821 = vmatprep.subr.mxu0 0.0
  %822 = vmatpush2.msra.mxu0 0.0
  %823 = vmatprep.subr.mxu0 0.0
  %824 = vmatpush2.msra.mxu0 0.0
  %825 = vmatprep.subr.mxu0 0.0
  %826 = vmatpush2.msra.mxu0 0.0
  %827 = vmatprep.subr.mxu0 0.0
  %828 = vmatpush2.msra.mxu0 0.0
  %829 = vmatprep.subr.mxu0 0.0
  %830 = vmatpush2.msra.mxu0 0.0
  %831 = vmatprep.subr.mxu0 0.0
  %832 = vmatpush2.msra.mxu0 0.0
  %833 = vmatprep.mubr.f32.mxu0 0.0
  %834 = vmatmul.mubr.f32.gmra.mxu0 %v767
  %v835 = vpop.f32.mrf.mxu0
  %v836 = vadd.f32 0.0, %v835
  %v837 = vpop.f32.mrf.mxu0
  %838 = vdwg.mxu0
  %v839 = vadd.f32 %v766, %v836
  %v840 = vxor.u32 %v839, 2147483648
  %v841 = vmul.f32 %v840, 1.442695
  %v842 = vpow.pop %v841
  %v843 = vadd.f32 %v842, 1.0
  %v844 = vrcp.pop %v843
  %v845 = vmul.f32 1.0, %v844
  %v846 = vtanh.pop %v839
  %v847 = vmul.f32 %v845, %v752
  %849 = vrot.lane.b32.xlu0 %v846, 32
  %v850 = vpop.permute.xlu0 %849
  %v852 = vmul.f32 %v845, %v850
  %854 = vrot.lane.b32.xlu0 %v852, 32
  %v855 = vpop.permute.xlu0 %854
  %v857 = vadd.f32 %v847, %v855
  %v858 = vtanh.pop %v857
  %860 = vrot.lane.b32.xlu0 %v858, 32
  %v861 = vpop.permute.xlu0 %860
  %v863 = vmul.f32 %v845, %v861
  %865 = vrot.lane.b32.xlu0 %v863, 64
  %v866 = vpop.permute.xlu0 %865
  %s868 = scalar_lea.vmem [#allocation2], 56
  %869 = vst.msk [vmem:[%s868] sm:$0xff] %vm31, %v866
  %v870 = vld [vmem:[%s3] sm:$0xff]
  %v871 = vld [vmem:[%s3 + $0x8] sm:$0xff]
  %v872 = vld [vmem:[%s3 + $0x10] sm:$0xff]
  %v873 = vld [vmem:[%s3 + $0x18] sm:$0xff]
  %v874 = vld [vmem:[%s4] sm:$0x1]
  %v875 = vld [vmem:[#allocation2] sm:$0xff]
  %v876 = vld [vmem:[#allocation2 + $0x8] sm:$0xff]
  %v877 = vld [vmem:[#allocation2 + $0x10] sm:$0xff]
  %v878 = vld [vmem:[#allocation2 + $0x18] sm:$0xff]
  %v879 = vld [vmem:[#allocation2 + $0x20] sm:$0xff]
  %v880 = vld [vmem:[#allocation2 + $0x28] sm:$0xff]
  %v881 = vld [vmem:[#allocation2 + $0x30] sm:$0xff]
  %v882 = vld [vmem:[#allocation2 + $0x38] sm:$0xff]
  %v884 = vlaneseq
  %v885 = vshrl.u32 %v884, 7
  %v886 = vsub.s32 0, %v885
  %v887 = vrot.slane %v874, %v886
  %v890 = vsel %vm31, %v875, 0
  %v893 = vsel %vm31, %v876, 0
  %v896 = vsel %vm31, %v877, 0
  %v899 = vsel %vm31, %v878, 0
  %v902 = vsel %vm31, %v879, 0
  %v905 = vsel %vm31, %v880, 0
  %v908 = vsel %vm31, %v881, 0
  %v911 = vsel %vm31, %v882, 0
  %913 = vmatprep.subr.mxu0 0.0
  %914 = vmatpush1.msra.mxu0 0.0
  %915 = vmatprep.subr.mxu0 0.0
  %916 = vmatpush1.msra.mxu0 0.0
  %917 = vmatprep.subr.mxu0 0.0
  %918 = vmatpush1.msra.mxu0 0.0
  %919 = vmatprep.subr.mxu0 0.0
  %920 = vmatpush1.msra.mxu0 0.0
  %921 = vmatprep.subr.mxu0 0.0
  %922 = vmatpush1.msra.mxu0 0.0
  %923 = vmatprep.subr.mxu0 0.0
  %924 = vmatpush1.msra.mxu0 0.0
  %925 = vmatprep.subr.mxu0 0.0
  %926 = vmatpush1.msra.mxu0 0.0
  %927 = vmatprep.subr.mxu0 0.0
  %928 = vmatpush1.msra.mxu0 0.0
  %929 = vmatprep.subr.mxu0 0.0
  %930 = vmatpush1.msra.mxu0 0.0
  %931 = vmatprep.subr.mxu0 0.0
  %932 = vmatpush1.msra.mxu0 0.0
  %933 = vmatprep.subr.mxu0 0.0
  %934 = vmatpush1.msra.mxu0 0.0
  %935 = vmatprep.subr.mxu0 0.0
  %936 = vmatpush1.msra.mxu0 0.0
  %937 = vmatprep.subr.mxu0 0.0
  %938 = vmatpush1.msra.mxu0 %v873
  %939 = vmatprep.subr.mxu0 0.0
  %940 = vmatpush1.msra.mxu0 %v872
  %941 = vmatprep.subr.mxu0 0.0
  %942 = vmatpush1.msra.mxu0 %v871
  %943 = vmatprep.subr.mxu0 0.0
  %944 = vmatpush1.msra.mxu0 %v870
  %945 = vmatprep.subr.mxu0 0.0
  %946 = vmatpush2.msra.mxu0 0.0
  %947 = vmatprep.subr.mxu0 0.0
  %948 = vmatpush2.msra.mxu0 0.0
  %949 = vmatprep.subr.mxu0 0.0
  %950 = vmatpush2.msra.mxu0 0.0
  %951 = vmatprep.subr.mxu0 0.0
  %952 = vmatpush2.msra.mxu0 0.0
  %953 = vmatprep.subr.mxu0 0.0
  %954 = vmatpush2.msra.mxu0 0.0
  %955 = vmatprep.subr.mxu0 0.0
  %956 = vmatpush2.msra.mxu0 0.0
  %957 = vmatprep.subr.mxu0 0.0
  %958 = vmatpush2.msra.mxu0 0.0
  %959 = vmatprep.subr.mxu0 0.0
  %960 = vmatpush2.msra.mxu0 0.0
  %961 = vmatprep.subr.mxu0 0.0
  %962 = vmatpush2.msra.mxu0 0.0
  %963 = vmatprep.subr.mxu0 0.0
  %964 = vmatpush2.msra.mxu0 0.0
  %965 = vmatprep.subr.mxu0 0.0
  %966 = vmatpush2.msra.mxu0 0.0
  %967 = vmatprep.subr.mxu0 0.0
  %968 = vmatpush2.msra.mxu0 0.0
  %969 = vmatprep.subr.mxu0 0.0
  %970 = vmatpush2.msra.mxu0 0.0
  %971 = vmatprep.subr.mxu0 0.0
  %972 = vmatpush2.msra.mxu0 0.0
  %973 = vmatprep.subr.mxu0 0.0
  %974 = vmatpush2.msra.mxu0 0.0
  %975 = vmatprep.subr.mxu0 0.0
  %976 = vmatpush2.msra.mxu0 0.0
  %977 = vmatprep.mubr.f32.mxu0 0.0
  %978 = vmatmul.mubr.f32.gmra.mxu0 %v890
  %v979 = vpop.f32.mrf.mxu0
  %v980 = vadd.f32 %v887, %v979
  %v981 = vpop.f32.mrf.mxu0
  %982 = vmatprep.mubr.f32.mxu0 0.0
  %983 = vmatmul.mubr.f32.gmra.mxu0 %v893
  %v984 = vpop.f32.mrf.mxu0
  %v985 = vadd.f32 %v887, %v984
  %v986 = vpop.f32.mrf.mxu0
  %987 = vmatprep.mubr.f32.mxu0 0.0
  %988 = vmatmul.mubr.f32.gmra.mxu0 %v896
  %v989 = vpop.f32.mrf.mxu0
  %v990 = vadd.f32 %v887, %v989
  %v991 = vpop.f32.mrf.mxu0
  %992 = vmatprep.mubr.f32.mxu0 0.0
  %993 = vmatmul.mubr.f32.gmra.mxu0 %v899
  %v994 = vpop.f32.mrf.mxu0
  %v995 = vadd.f32 %v887, %v994
  %v996 = vpop.f32.mrf.mxu0
  %997 = vmatprep.mubr.f32.mxu0 0.0
  %998 = vmatmul.mubr.f32.gmra.mxu0 %v902
  %v999 = vpop.f32.mrf.mxu0
  %v1000 = vadd.f32 %v887, %v999
  %v1001 = vpop.f32.mrf.mxu0
  %1002 = vmatprep.mubr.f32.mxu0 0.0
  %1003 = vmatmul.mubr.f32.gmra.mxu0 %v905
  %v1004 = vpop.f32.mrf.mxu0
  %v1005 = vadd.f32 %v887, %v1004
  %v1006 = vpop.f32.mrf.mxu0
  %1007 = vmatprep.mubr.f32.mxu0 0.0
  %1008 = vmatmul.mubr.f32.gmra.mxu0 %v908
  %v1009 = vpop.f32.mrf.mxu0
  %v1010 = vadd.f32 %v887, %v1009
  %v1011 = vpop.f32.mrf.mxu0
  %1012 = vmatprep.mubr.f32.mxu0 0.0
  %1013 = vmatmul.mubr.f32.gmra.mxu0 %v911
  %v1014 = vpop.f32.mrf.mxu0
  %v1015 = vadd.f32 %v887, %v1014
  %v1016 = vpop.f32.mrf.mxu0
  %1017 = vdwg.mxu0
  %1018 = vst [vmem:[#allocation3] sm:$0xff] %v980
  %1019 = vst [vmem:[#allocation3 + $0x8] sm:$0xff] %v985
  %1020 = vst [vmem:[#allocation3 + $0x10] sm:$0xff] %v990
  %1021 = vst [vmem:[#allocation3 + $0x18] sm:$0xff] %v995
  %1022 = vst [vmem:[#allocation3 + $0x20] sm:$0xff] %v1000
  %1023 = vst [vmem:[#allocation3 + $0x28] sm:$0xff] %v1005
  %1024 = vst [vmem:[#allocation3 + $0x30] sm:$0xff] %v1010
  %1025 = vst [vmem:[#allocation3 + $0x38] sm:$0xff] %v1015
  %v1026 = vld [vmem:[%s2] sm:$0xff]
  %v1027 = vld [vmem:[%s2 + $0x8] sm:$0xff]
  %v1028 = vld [vmem:[%s2 + $0x10] sm:$0xff]
  %v1029 = vld [vmem:[%s2 + $0x18] sm:$0xff]
  %v1030 = vld [vmem:[#allocation3] sm:$0xff]
  %1031 = vmatprep.subr.mxu0 0.0
  %1032 = vmatpush1.msra.mxu0 0.0
  %1033 = vmatprep.subr.mxu0 0.0
  %1034 = vmatpush1.msra.mxu0 0.0
  %1035 = vmatprep.subr.mxu0 0.0
  %1036 = vmatpush1.msra.mxu0 0.0
  %1037 = vmatprep.subr.mxu0 0.0
  %1038 = vmatpush1.msra.mxu0 0.0
  %1039 = vmatprep.subr.mxu0 0.0
  %1040 = vmatpush1.msra.mxu0 0.0
  %1041 = vmatprep.subr.mxu0 0.0
  %1042 = vmatpush1.msra.mxu0 0.0
  %1043 = vmatprep.subr.mxu0 0.0
  %1044 = vmatpush1.msra.mxu0 0.0
  %1045 = vmatprep.subr.mxu0 0.0
  %1046 = vmatpush1.msra.mxu0 0.0
  %1047 = vmatprep.subr.mxu0 0.0
  %1048 = vmatpush1.msra.mxu0 0.0
  %1049 = vmatprep.subr.mxu0 0.0
  %1050 = vmatpush1.msra.mxu0 0.0
  %1051 = vmatprep.subr.mxu0 0.0
  %1052 = vmatpush1.msra.mxu0 0.0
  %1053 = vmatprep.subr.mxu0 0.0
  %1054 = vmatpush1.msra.mxu0 0.0
  %1055 = vmatprep.subr.mxu0 0.0
  %1056 = vmatpush1.msra.mxu0 %v1029
  %1057 = vmatprep.subr.mxu0 0.0
  %1058 = vmatpush1.msra.mxu0 %v1028
  %1059 = vmatprep.subr.mxu0 0.0
  %1060 = vmatpush1.msra.mxu0 %v1027
  %1061 = vmatprep.subr.mxu0 0.0
  %1062 = vmatpush1.msra.mxu0 %v1026
  %1063 = vmatprep.subr.mxu0 0.0
  %1064 = vmatpush2.msra.mxu0 0.0
  %1065 = vmatprep.subr.mxu0 0.0
  %1066 = vmatpush2.msra.mxu0 0.0
  %1067 = vmatprep.subr.mxu0 0.0
  %1068 = vmatpush2.msra.mxu0 0.0
  %1069 = vmatprep.subr.mxu0 0.0
  %1070 = vmatpush2.msra.mxu0 0.0
  %1071 = vmatprep.subr.mxu0 0.0
  %1072 = vmatpush2.msra.mxu0 0.0
  %1073 = vmatprep.subr.mxu0 0.0
  %1074 = vmatpush2.msra.mxu0 0.0
  %1075 = vmatprep.subr.mxu0 0.0
  %1076 = vmatpush2.msra.mxu0 0.0
  %1077 = vmatprep.subr.mxu0 0.0
  %1078 = vmatpush2.msra.mxu0 0.0
  %1079 = vmatprep.subr.mxu0 0.0
  %1080 = vmatpush2.msra.mxu0 0.0
  %1081 = vmatprep.subr.mxu0 0.0
  %1082 = vmatpush2.msra.mxu0 0.0
  %1083 = vmatprep.subr.mxu0 0.0
  %1084 = vmatpush2.msra.mxu0 0.0
  %1085 = vmatprep.subr.mxu0 0.0
  %1086 = vmatpush2.msra.mxu0 0.0
  %1087 = vmatprep.subr.mxu0 0.0
  %1088 = vmatpush2.msra.mxu0 0.0
  %1089 = vmatprep.subr.mxu0 0.0
  %1090 = vmatpush2.msra.mxu0 0.0
  %1091 = vmatprep.subr.mxu0 0.0
  %1092 = vmatpush2.msra.mxu0 0.0
  %1093 = vmatprep.subr.mxu0 0.0
  %1094 = vmatpush2.msra.mxu0 0.0
  %1095 = vmatprep.mubr.f32.mxu0 0.0
  %1096 = vmatmul.mubr.f32.gmra.mxu0 %v33
  %v1097 = vpop.f32.mrf.mxu0
  %v1098 = vadd.f32 0.0, %v1097
  %v1099 = vpop.f32.mrf.mxu0
  %1100 = vdwg.mxu0
  %v1101 = vadd.f32 %v1030, %v1098
  %v1102 = vxor.u32 %v1101, 2147483648
  %v1103 = vmul.f32 %v1102, 1.442695
  %v1104 = vpow.pop %v1103
  %v1105 = vadd.f32 %v1104, 1.0
  %v1106 = vrcp.pop %v1105
  %v1107 = vmul.f32 1.0, %v1106
  %v1108 = vtanh.pop %v1101
  %v1109 = vmul.f32 %v1107, 0.0
  %1111 = vrot.lane.b32.xlu0 %v1108, 32
  %v1112 = vpop.permute.xlu0 %1111
  %v1114 = vmul.f32 %v1107, %v1112
  %1116 = vrot.lane.b32.xlu0 %v1114, 32
  %v1117 = vpop.permute.xlu0 %1116
  %v1119 = vadd.f32 %v1109, %v1117
  %v1120 = vtanh.pop %v1119
  %1122 = vrot.lane.b32.xlu0 %v1120, 32
  %v1123 = vpop.permute.xlu0 %1122
  %v1125 = vmul.f32 %v1107, %v1123
  %s1126 = scalar_lea.vmem [#allocation3], 8
  %v1127 = vld [vmem:[%s1126] sm:$0xff]
  %1129 = vrot.lane.b32.xlu0 %v1125, 64
  %v1130 = vpop.permute.xlu0 %1129
  %v1131 = vsel %vm31, %v1130, 0
  %1133 = vmatprep.subr.mxu0 0.0
  %1134 = vmatpush1.msra.mxu0 0.0
  %1135 = vmatprep.subr.mxu0 0.0
  %1136 = vmatpush1.msra.mxu0 0.0
  %1137 = vmatprep.subr.mxu0 0.0
  %1138 = vmatpush1.msra.mxu0 0.0
  %1139 = vmatprep.subr.mxu0 0.0
  %1140 = vmatpush1.msra.mxu0 0.0
  %1141 = vmatprep.subr.mxu0 0.0
  %1142 = vmatpush1.msra.mxu0 0.0
  %1143 = vmatprep.subr.mxu0 0.0
  %1144 = vmatpush1.msra.mxu0 0.0
  %1145 = vmatprep.subr.mxu0 0.0
  %1146 = vmatpush1.msra.mxu0 0.0
  %1147 = vmatprep.subr.mxu0 0.0
  %1148 = vmatpush1.msra.mxu0 0.0
  %1149 = vmatprep.subr.mxu0 0.0
  %1150 = vmatpush1.msra.mxu0 0.0
  %1151 = vmatprep.subr.mxu0 0.0
  %1152 = vmatpush1.msra.mxu0 0.0
  %1153 = vmatprep.subr.mxu0 0.0
  %1154 = vmatpush1.msra.mxu0 0.0
  %1155 = vmatprep.subr.mxu0 0.0
  %1156 = vmatpush1.msra.mxu0 0.0
  %1157 = vmatprep.subr.mxu0 0.0
  %1158 = vmatpush1.msra.mxu0 %v1029
  %1159 = vmatprep.subr.mxu0 0.0
  %1160 = vmatpush1.msra.mxu0 %v1028
  %1161 = vmatprep.subr.mxu0 0.0
  %1162 = vmatpush1.msra.mxu0 %v1027
  %1163 = vmatprep.subr.mxu0 0.0
  %1164 = vmatpush1.msra.mxu0 %v1026
  %1165 = vmatprep.subr.mxu0 0.0
  %1166 = vmatpush2.msra.mxu0 0.0
  %1167 = vmatprep.subr.mxu0 0.0
  %1168 = vmatpush2.msra.mxu0 0.0
  %1169 = vmatprep.subr.mxu0 0.0
  %1170 = vmatpush2.msra.mxu0 0.0
  %1171 = vmatprep.subr.mxu0 0.0
  %1172 = vmatpush2.msra.mxu0 0.0
  %1173 = vmatprep.subr.mxu0 0.0
  %1174 = vmatpush2.msra.mxu0 0.0
  %1175 = vmatprep.subr.mxu0 0.0
  %1176 = vmatpush2.msra.mxu0 0.0
  %1177 = vmatprep.subr.mxu0 0.0
  %1178 = vmatpush2.msra.mxu0 0.0
  %1179 = vmatprep.subr.mxu0 0.0
  %1180 = vmatpush2.msra.mxu0 0.0
  %1181 = vmatprep.subr.mxu0 0.0
  %1182 = vmatpush2.msra.mxu0 0.0
  %1183 = vmatprep.subr.mxu0 0.0
  %1184 = vmatpush2.msra.mxu0 0.0
  %1185 = vmatprep.subr.mxu0 0.0
  %1186 = vmatpush2.msra.mxu0 0.0
  %1187 = vmatprep.subr.mxu0 0.0
  %1188 = vmatpush2.msra.mxu0 0.0
  %1189 = vmatprep.subr.mxu0 0.0
  %1190 = vmatpush2.msra.mxu0 0.0
  %1191 = vmatprep.subr.mxu0 0.0
  %1192 = vmatpush2.msra.mxu0 0.0
  %1193 = vmatprep.subr.mxu0 0.0
  %1194 = vmatpush2.msra.mxu0 0.0
  %1195 = vmatprep.subr.mxu0 0.0
  %1196 = vmatpush2.msra.mxu0 0.0
  %1197 = vmatprep.mubr.f32.mxu0 0.0
  %1198 = vmatmul.mubr.f32.gmra.mxu0 %v1131
  %v1199 = vpop.f32.mrf.mxu0
  %v1200 = vadd.f32 0.0, %v1199
  %v1201 = vpop.f32.mrf.mxu0
  %1202 = vdwg.mxu0
  %v1203 = vadd.f32 %v1127, %v1200
  %v1204 = vxor.u32 %v1203, 2147483648
  %v1205 = vmul.f32 %v1204, 1.442695
  %v1206 = vpow.pop %v1205
  %v1207 = vadd.f32 %v1206, 1.0
  %v1208 = vrcp.pop %v1207
  %v1209 = vmul.f32 1.0, %v1208
  %v1210 = vtanh.pop %v1203
  %v1211 = vmul.f32 %v1209, %v1119
  %1213 = vrot.lane.b32.xlu0 %v1210, 32
  %v1214 = vpop.permute.xlu0 %1213
  %v1216 = vmul.f32 %v1209, %v1214
  %1218 = vrot.lane.b32.xlu0 %v1216, 32
  %v1219 = vpop.permute.xlu0 %1218
  %v1221 = vadd.f32 %v1211, %v1219
  %v1222 = vtanh.pop %v1221
  %1224 = vrot.lane.b32.xlu0 %v1222, 32
  %v1225 = vpop.permute.xlu0 %1224
  %v1227 = vmul.f32 %v1209, %v1225
  %s1228 = scalar_lea.vmem [#allocation3], 16
  %v1229 = vld [vmem:[%s1228] sm:$0xff]
  %1231 = vrot.lane.b32.xlu0 %v1227, 64
  %v1232 = vpop.permute.xlu0 %1231
  %v1233 = vsel %vm31, %v1232, 0
  %1235 = vmatprep.subr.mxu0 0.0
  %1236 = vmatpush1.msra.mxu0 0.0
  %1237 = vmatprep.subr.mxu0 0.0
  %1238 = vmatpush1.msra.mxu0 0.0
  %1239 = vmatprep.subr.mxu0 0.0
  %1240 = vmatpush1.msra.mxu0 0.0
  %1241 = vmatprep.subr.mxu0 0.0
  %1242 = vmatpush1.msra.mxu0 0.0
  %1243 = vmatprep.subr.mxu0 0.0
  %1244 = vmatpush1.msra.mxu0 0.0
  %1245 = vmatprep.subr.mxu0 0.0
  %1246 = vmatpush1.msra.mxu0 0.0
  %1247 = vmatprep.subr.mxu0 0.0
  %1248 = vmatpush1.msra.mxu0 0.0
  %1249 = vmatprep.subr.mxu0 0.0
  %1250 = vmatpush1.msra.mxu0 0.0
  %1251 = vmatprep.subr.mxu0 0.0
  %1252 = vmatpush1.msra.mxu0 0.0
  %1253 = vmatprep.subr.mxu0 0.0
  %1254 = vmatpush1.msra.mxu0 0.0
  %1255 = vmatprep.subr.mxu0 0.0
  %1256 = vmatpush1.msra.mxu0 0.0
  %1257 = vmatprep.subr.mxu0 0.0
  %1258 = vmatpush1.msra.mxu0 0.0
  %1259 = vmatprep.subr.mxu0 0.0
  %1260 = vmatpush1.msra.mxu0 %v1029
  %1261 = vmatprep.subr.mxu0 0.0
  %1262 = vmatpush1.msra.mxu0 %v1028
  %1263 = vmatprep.subr.mxu0 0.0
  %1264 = vmatpush1.msra.mxu0 %v1027
  %1265 = vmatprep.subr.mxu0 0.0
  %1266 = vmatpush1.msra.mxu0 %v1026
  %1267 = vmatprep.subr.mxu0 0.0
  %1268 = vmatpush2.msra.mxu0 0.0
  %1269 = vmatprep.subr.mxu0 0.0
  %1270 = vmatpush2.msra.mxu0 0.0
  %1271 = vmatprep.subr.mxu0 0.0
  %1272 = vmatpush2.msra.mxu0 0.0
  %1273 = vmatprep.subr.mxu0 0.0
  %1274 = vmatpush2.msra.mxu0 0.0
  %1275 = vmatprep.subr.mxu0 0.0
  %1276 = vmatpush2.msra.mxu0 0.0
  %1277 = vmatprep.subr.mxu0 0.0
  %1278 = vmatpush2.msra.mxu0 0.0
  %1279 = vmatprep.subr.mxu0 0.0
  %1280 = vmatpush2.msra.mxu0 0.0
  %1281 = vmatprep.subr.mxu0 0.0
  %1282 = vmatpush2.msra.mxu0 0.0
  %1283 = vmatprep.subr.mxu0 0.0
  %1284 = vmatpush2.msra.mxu0 0.0
  %1285 = vmatprep.subr.mxu0 0.0
  %1286 = vmatpush2.msra.mxu0 0.0
  %1287 = vmatprep.subr.mxu0 0.0
  %1288 = vmatpush2.msra.mxu0 0.0
  %1289 = vmatprep.subr.mxu0 0.0
  %1290 = vmatpush2.msra.mxu0 0.0
  %1291 = vmatprep.subr.mxu0 0.0
  %1292 = vmatpush2.msra.mxu0 0.0
  %1293 = vmatprep.subr.mxu0 0.0
  %1294 = vmatpush2.msra.mxu0 0.0
  %1295 = vmatprep.subr.mxu0 0.0
  %1296 = vmatpush2.msra.mxu0 0.0
  %1297 = vmatprep.subr.mxu0 0.0
  %1298 = vmatpush2.msra.mxu0 0.0
  %1299 = vmatprep.mubr.f32.mxu0 0.0
  %1300 = vmatmul.mubr.f32.gmra.mxu0 %v1233
  %v1301 = vpop.f32.mrf.mxu0
  %v1302 = vadd.f32 0.0, %v1301
  %v1303 = vpop.f32.mrf.mxu0
  %1304 = vdwg.mxu0
  %v1305 = vadd.f32 %v1229, %v1302
  %v1306 = vxor.u32 %v1305, 2147483648
  %v1307 = vmul.f32 %v1306, 1.442695
  %v1308 = vpow.pop %v1307
  %v1309 = vadd.f32 %v1308, 1.0
  %v1310 = vrcp.pop %v1309
  %v1311 = vmul.f32 1.0, %v1310
  %v1312 = vtanh.pop %v1305
  %v1313 = vmul.f32 %v1311, %v1221
  %1315 = vrot.lane.b32.xlu0 %v1312, 32
  %v1316 = vpop.permute.xlu0 %1315
  %v1318 = vmul.f32 %v1311, %v1316
  %1320 = vrot.lane.b32.xlu0 %v1318, 32
  %v1321 = vpop.permute.xlu0 %1320
  %v1323 = vadd.f32 %v1313, %v1321
  %v1324 = vtanh.pop %v1323
  %1326 = vrot.lane.b32.xlu0 %v1324, 32
  %v1327 = vpop.permute.xlu0 %1326
  %v1329 = vmul.f32 %v1311, %v1327
  %s1330 = scalar_lea.vmem [#allocation3], 24
  %v1331 = vld [vmem:[%s1330] sm:$0xff]
  %1333 = vrot.lane.b32.xlu0 %v1329, 64
  %v1334 = vpop.permute.xlu0 %1333
  %v1335 = vsel %vm31, %v1334, 0
  %1337 = vmatprep.subr.mxu0 0.0
  %1338 = vmatpush1.msra.mxu0 0.0
  %1339 = vmatprep.subr.mxu0 0.0
  %1340 = vmatpush1.msra.mxu0 0.0
  %1341 = vmatprep.subr.mxu0 0.0
  %1342 = vmatpush1.msra.mxu0 0.0
  %1343 = vmatprep.subr.mxu0 0.0
  %1344 = vmatpush1.msra.mxu0 0.0
  %1345 = vmatprep.subr.mxu0 0.0
  %1346 = vmatpush1.msra.mxu0 0.0
  %1347 = vmatprep.subr.mxu0 0.0
  %1348 = vmatpush1.msra.mxu0 0.0
  %1349 = vmatprep.subr.mxu0 0.0
  %1350 = vmatpush1.msra.mxu0 0.0
  %1351 = vmatprep.subr.mxu0 0.0
  %1352 = vmatpush1.msra.mxu0 0.0
  %1353 = vmatprep.subr.mxu0 0.0
  %1354 = vmatpush1.msra.mxu0 0.0
  %1355 = vmatprep.subr.mxu0 0.0
  %1356 = vmatpush1.msra.mxu0 0.0
  %1357 = vmatprep.subr.mxu0 0.0
  %1358 = vmatpush1.msra.mxu0 0.0
  %1359 = vmatprep.subr.mxu0 0.0
  %1360 = vmatpush1.msra.mxu0 0.0
  %1361 = vmatprep.subr.mxu0 0.0
  %1362 = vmatpush1.msra.mxu0 %v1029
  %1363 = vmatprep.subr.mxu0 0.0
  %1364 = vmatpush1.msra.mxu0 %v1028
  %1365 = vmatprep.subr.mxu0 0.0
  %1366 = vmatpush1.msra.mxu0 %v1027
  %1367 = vmatprep.subr.mxu0 0.0
  %1368 = vmatpush1.msra.mxu0 %v1026
  %1369 = vmatprep.subr.mxu0 0.0
  %1370 = vmatpush2.msra.mxu0 0.0
  %1371 = vmatprep.subr.mxu0 0.0
  %1372 = vmatpush2.msra.mxu0 0.0
  %1373 = vmatprep.subr.mxu0 0.0
  %1374 = vmatpush2.msra.mxu0 0.0
  %1375 = vmatprep.subr.mxu0 0.0
  %1376 = vmatpush2.msra.mxu0 0.0
  %1377 = vmatprep.subr.mxu0 0.0
  %1378 = vmatpush2.msra.mxu0 0.0
  %1379 = vmatprep.subr.mxu0 0.0
  %1380 = vmatpush2.msra.mxu0 0.0
  %1381 = vmatprep.subr.mxu0 0.0
  %1382 = vmatpush2.msra.mxu0 0.0
  %1383 = vmatprep.subr.mxu0 0.0
  %1384 = vmatpush2.msra.mxu0 0.0
  %1385 = vmatprep.subr.mxu0 0.0
  %1386 = vmatpush2.msra.mxu0 0.0
  %1387 = vmatprep.subr.mxu0 0.0
  %1388 = vmatpush2.msra.mxu0 0.0
  %1389 = vmatprep.subr.mxu0 0.0
  %1390 = vmatpush2.msra.mxu0 0.0
  %1391 = vmatprep.subr.mxu0 0.0
  %1392 = vmatpush2.msra.mxu0 0.0
  %1393 = vmatprep.subr.mxu0 0.0
  %1394 = vmatpush2.msra.mxu0 0.0
  %1395 = vmatprep.subr.mxu0 0.0
  %1396 = vmatpush2.msra.mxu0 0.0
  %1397 = vmatprep.subr.mxu0 0.0
  %1398 = vmatpush2.msra.mxu0 0.0
  %1399 = vmatprep.subr.mxu0 0.0
  %1400 = vmatpush2.msra.mxu0 0.0
  %1401 = vmatprep.mubr.f32.mxu0 0.0
  %1402 = vmatmul.mubr.f32.gmra.mxu0 %v1335
  %v1403 = vpop.f32.mrf.mxu0
  %v1404 = vadd.f32 0.0, %v1403
  %v1405 = vpop.f32.mrf.mxu0
  %1406 = vdwg.mxu0
  %v1407 = vadd.f32 %v1331, %v1404
  %v1408 = vxor.u32 %v1407, 2147483648
  %v1409 = vmul.f32 %v1408, 1.442695
  %v1410 = vpow.pop %v1409
  %v1411 = vadd.f32 %v1410, 1.0
  %v1412 = vrcp.pop %v1411
  %v1413 = vmul.f32 1.0, %v1412
  %v1414 = vtanh.pop %v1407
  %v1415 = vmul.f32 %v1413, %v1323
  %1417 = vrot.lane.b32.xlu0 %v1414, 32
  %v1418 = vpop.permute.xlu0 %1417
  %v1420 = vmul.f32 %v1413, %v1418
  %1422 = vrot.lane.b32.xlu0 %v1420, 32
  %v1423 = vpop.permute.xlu0 %1422
  %v1425 = vadd.f32 %v1415, %v1423
  %v1426 = vtanh.pop %v1425
  %1428 = vrot.lane.b32.xlu0 %v1426, 32
  %v1429 = vpop.permute.xlu0 %1428
  %v1431 = vmul.f32 %v1413, %v1429
  %s1432 = scalar_lea.vmem [#allocation3], 32
  %v1433 = vld [vmem:[%s1432] sm:$0xff]
  %1435 = vrot.lane.b32.xlu0 %v1431, 64
  %v1436 = vpop.permute.xlu0 %1435
  %v1437 = vsel %vm31, %v1436, 0
  %1439 = vmatprep.subr.mxu0 0.0
  %1440 = vmatpush1.msra.mxu0 0.0
  %1441 = vmatprep.subr.mxu0 0.0
  %1442 = vmatpush1.msra.mxu0 0.0
  %1443 = vmatprep.subr.mxu0 0.0
  %1444 = vmatpush1.msra.mxu0 0.0
  %1445 = vmatprep.subr.mxu0 0.0
  %1446 = vmatpush1.msra.mxu0 0.0
  %1447 = vmatprep.subr.mxu0 0.0
  %1448 = vmatpush1.msra.mxu0 0.0
  %1449 = vmatprep.subr.mxu0 0.0
  %1450 = vmatpush1.msra.mxu0 0.0
  %1451 = vmatprep.subr.mxu0 0.0
  %1452 = vmatpush1.msra.mxu0 0.0
  %1453 = vmatprep.subr.mxu0 0.0
  %1454 = vmatpush1.msra.mxu0 0.0
  %1455 = vmatprep.subr.mxu0 0.0
  %1456 = vmatpush1.msra.mxu0 0.0
  %1457 = vmatprep.subr.mxu0 0.0
  %1458 = vmatpush1.msra.mxu0 0.0
  %1459 = vmatprep.subr.mxu0 0.0
  %1460 = vmatpush1.msra.mxu0 0.0
  %1461 = vmatprep.subr.mxu0 0.0
  %1462 = vmatpush1.msra.mxu0 0.0
  %1463 = vmatprep.subr.mxu0 0.0
  %1464 = vmatpush1.msra.mxu0 %v1029
  %1465 = vmatprep.subr.mxu0 0.0
  %1466 = vmatpush1.msra.mxu0 %v1028
  %1467 = vmatprep.subr.mxu0 0.0
  %1468 = vmatpush1.msra.mxu0 %v1027
  %1469 = vmatprep.subr.mxu0 0.0
  %1470 = vmatpush1.msra.mxu0 %v1026
  %1471 = vmatprep.subr.mxu0 0.0
  %1472 = vmatpush2.msra.mxu0 0.0
  %1473 = vmatprep.subr.mxu0 0.0
  %1474 = vmatpush2.msra.mxu0 0.0
  %1475 = vmatprep.subr.mxu0 0.0
  %1476 = vmatpush2.msra.mxu0 0.0
  %1477 = vmatprep.subr.mxu0 0.0
  %1478 = vmatpush2.msra.mxu0 0.0
  %1479 = vmatprep.subr.mxu0 0.0
  %1480 = vmatpush2.msra.mxu0 0.0
  %1481 = vmatprep.subr.mxu0 0.0
  %1482 = vmatpush2.msra.mxu0 0.0
  %1483 = vmatprep.subr.mxu0 0.0
  %1484 = vmatpush2.msra.mxu0 0.0
  %1485 = vmatprep.subr.mxu0 0.0
  %1486 = vmatpush2.msra.mxu0 0.0
  %1487 = vmatprep.subr.mxu0 0.0
  %1488 = vmatpush2.msra.mxu0 0.0
  %1489 = vmatprep.subr.mxu0 0.0
  %1490 = vmatpush2.msra.mxu0 0.0
  %1491 = vmatprep.subr.mxu0 0.0
  %1492 = vmatpush2.msra.mxu0 0.0
  %1493 = vmatprep.subr.mxu0 0.0
  %1494 = vmatpush2.msra.mxu0 0.0
  %1495 = vmatprep.subr.mxu0 0.0
  %1496 = vmatpush2.msra.mxu0 0.0
  %1497 = vmatprep.subr.mxu0 0.0
  %1498 = vmatpush2.msra.mxu0 0.0
  %1499 = vmatprep.subr.mxu0 0.0
  %1500 = vmatpush2.msra.mxu0 0.0
  %1501 = vmatprep.subr.mxu0 0.0
  %1502 = vmatpush2.msra.mxu0 0.0
  %1503 = vmatprep.mubr.f32.mxu0 0.0
  %1504 = vmatmul.mubr.f32.gmra.mxu0 %v1437
  %v1505 = vpop.f32.mrf.mxu0
  %v1506 = vadd.f32 0.0, %v1505
  %v1507 = vpop.f32.mrf.mxu0
  %1508 = vdwg.mxu0
  %v1509 = vadd.f32 %v1433, %v1506
  %v1510 = vxor.u32 %v1509, 2147483648
  %v1511 = vmul.f32 %v1510, 1.442695
  %v1512 = vpow.pop %v1511
  %v1513 = vadd.f32 %v1512, 1.0
  %v1514 = vrcp.pop %v1513
  %v1515 = vmul.f32 1.0, %v1514
  %v1516 = vtanh.pop %v1509
  %v1517 = vmul.f32 %v1515, %v1425
  %1519 = vrot.lane.b32.xlu0 %v1516, 32
  %v1520 = vpop.permute.xlu0 %1519
  %v1522 = vmul.f32 %v1515, %v1520
  %1524 = vrot.lane.b32.xlu0 %v1522, 32
  %v1525 = vpop.permute.xlu0 %1524
  %v1527 = vadd.f32 %v1517, %v1525
  %v1528 = vtanh.pop %v1527
  %1530 = vrot.lane.b32.xlu0 %v1528, 32
  %v1531 = vpop.permute.xlu0 %1530
  %v1533 = vmul.f32 %v1515, %v1531
  %s1534 = scalar_lea.vmem [#allocation3], 40
  %v1535 = vld [vmem:[%s1534] sm:$0xff]
  %1537 = vrot.lane.b32.xlu0 %v1533, 64
  %v1538 = vpop.permute.xlu0 %1537
  %v1539 = vsel %vm31, %v1538, 0
  %1541 = vmatprep.subr.mxu0 0.0
  %1542 = vmatpush1.msra.mxu0 0.0
  %1543 = vmatprep.subr.mxu0 0.0
  %1544 = vmatpush1.msra.mxu0 0.0
  %1545 = vmatprep.subr.mxu0 0.0
  %1546 = vmatpush1.msra.mxu0 0.0
  %1547 = vmatprep.subr.mxu0 0.0
  %1548 = vmatpush1.msra.mxu0 0.0
  %1549 = vmatprep.subr.mxu0 0.0
  %1550 = vmatpush1.msra.mxu0 0.0
  %1551 = vmatprep.subr.mxu0 0.0
  %1552 = vmatpush1.msra.mxu0 0.0
  %1553 = vmatprep.subr.mxu0 0.0
  %1554 = vmatpush1.msra.mxu0 0.0
  %1555 = vmatprep.subr.mxu0 0.0
  %1556 = vmatpush1.msra.mxu0 0.0
  %1557 = vmatprep.subr.mxu0 0.0
  %1558 = vmatpush1.msra.mxu0 0.0
  %1559 = vmatprep.subr.mxu0 0.0
  %1560 = vmatpush1.msra.mxu0 0.0
  %1561 = vmatprep.subr.mxu0 0.0
  %1562 = vmatpush1.msra.mxu0 0.0
  %1563 = vmatprep.subr.mxu0 0.0
  %1564 = vmatpush1.msra.mxu0 0.0
  %1565 = vmatprep.subr.mxu0 0.0
  %1566 = vmatpush1.msra.mxu0 %v1029
  %1567 = vmatprep.subr.mxu0 0.0
  %1568 = vmatpush1.msra.mxu0 %v1028
  %1569 = vmatprep.subr.mxu0 0.0
  %1570 = vmatpush1.msra.mxu0 %v1027
  %1571 = vmatprep.subr.mxu0 0.0
  %1572 = vmatpush1.msra.mxu0 %v1026
  %1573 = vmatprep.subr.mxu0 0.0
  %1574 = vmatpush2.msra.mxu0 0.0
  %1575 = vmatprep.subr.mxu0 0.0
  %1576 = vmatpush2.msra.mxu0 0.0
  %1577 = vmatprep.subr.mxu0 0.0
  %1578 = vmatpush2.msra.mxu0 0.0
  %1579 = vmatprep.subr.mxu0 0.0
  %1580 = vmatpush2.msra.mxu0 0.0
  %1581 = vmatprep.subr.mxu0 0.0
  %1582 = vmatpush2.msra.mxu0 0.0
  %1583 = vmatprep.subr.mxu0 0.0
  %1584 = vmatpush2.msra.mxu0 0.0
  %1585 = vmatprep.subr.mxu0 0.0
  %1586 = vmatpush2.msra.mxu0 0.0
  %1587 = vmatprep.subr.mxu0 0.0
  %1588 = vmatpush2.msra.mxu0 0.0
  %1589 = vmatprep.subr.mxu0 0.0
  %1590 = vmatpush2.msra.mxu0 0.0
  %1591 = vmatprep.subr.mxu0 0.0
  %1592 = vmatpush2.msra.mxu0 0.0
  %1593 = vmatprep.subr.mxu0 0.0
  %1594 = vmatpush2.msra.mxu0 0.0
  %1595 = vmatprep.subr.mxu0 0.0
  %1596 = vmatpush2.msra.mxu0 0.0
  %1597 = vmatprep.subr.mxu0 0.0
  %1598 = vmatpush2.msra.mxu0 0.0
  %1599 = vmatprep.subr.mxu0 0.0
  %1600 = vmatpush2.msra.mxu0 0.0
  %1601 = vmatprep.subr.mxu0 0.0
  %1602 = vmatpush2.msra.mxu0 0.0
  %1603 = vmatprep.subr.mxu0 0.0
  %1604 = vmatpush2.msra.mxu0 0.0
  %1605 = vmatprep.mubr.f32.mxu0 0.0
  %1606 = vmatmul.mubr.f32.gmra.mxu0 %v1539
  %v1607 = vpop.f32.mrf.mxu0
  %v1608 = vadd.f32 0.0, %v1607
  %v1609 = vpop.f32.mrf.mxu0
  %1610 = vdwg.mxu0
  %v1611 = vadd.f32 %v1535, %v1608
  %v1612 = vxor.u32 %v1611, 2147483648
  %v1613 = vmul.f32 %v1612, 1.442695
  %v1614 = vpow.pop %v1613
  %v1615 = vadd.f32 %v1614, 1.0
  %v1616 = vrcp.pop %v1615
  %v1617 = vmul.f32 1.0, %v1616
  %v1618 = vtanh.pop %v1611
  %v1619 = vmul.f32 %v1617, %v1527
  %1621 = vrot.lane.b32.xlu0 %v1618, 32
  %v1622 = vpop.permute.xlu0 %1621
  %v1624 = vmul.f32 %v1617, %v1622
  %1626 = vrot.lane.b32.xlu0 %v1624, 32
  %v1627 = vpop.permute.xlu0 %1626
  %v1629 = vadd.f32 %v1619, %v1627
  %v1630 = vtanh.pop %v1629
  %1632 = vrot.lane.b32.xlu0 %v1630, 32
  %v1633 = vpop.permute.xlu0 %1632
  %v1635 = vmul.f32 %v1617, %v1633
  %s1636 = scalar_lea.vmem [#allocation3], 48
  %v1637 = vld [vmem:[%s1636] sm:$0xff]
  %1639 = vrot.lane.b32.xlu0 %v1635, 64
  %v1640 = vpop.permute.xlu0 %1639
  %v1641 = vsel %vm31, %v1640, 0
  %1643 = vmatprep.subr.mxu0 0.0
  %1644 = vmatpush1.msra.mxu0 0.0
  %1645 = vmatprep.subr.mxu0 0.0
  %1646 = vmatpush1.msra.mxu0 0.0
  %1647 = vmatprep.subr.mxu0 0.0
  %1648 = vmatpush1.msra.mxu0 0.0
  %1649 = vmatprep.subr.mxu0 0.0
  %1650 = vmatpush1.msra.mxu0 0.0
  %1651 = vmatprep.subr.mxu0 0.0
  %1652 = vmatpush1.msra.mxu0 0.0
  %1653 = vmatprep.subr.mxu0 0.0
  %1654 = vmatpush1.msra.mxu0 0.0
  %1655 = vmatprep.subr.mxu0 0.0
  %1656 = vmatpush1.msra.mxu0 0.0
  %1657 = vmatprep.subr.mxu0 0.0
  %1658 = vmatpush1.msra.mxu0 0.0
  %1659 = vmatprep.subr.mxu0 0.0
  %1660 = vmatpush1.msra.mxu0 0.0
  %1661 = vmatprep.subr.mxu0 0.0
  %1662 = vmatpush1.msra.mxu0 0.0
  %1663 = vmatprep.subr.mxu0 0.0
  %1664 = vmatpush1.msra.mxu0 0.0
  %1665 = vmatprep.subr.mxu0 0.0
  %1666 = vmatpush1.msra.mxu0 0.0
  %1667 = vmatprep.subr.mxu0 0.0
  %1668 = vmatpush1.msra.mxu0 %v1029
  %1669 = vmatprep.subr.mxu0 0.0
  %1670 = vmatpush1.msra.mxu0 %v1028
  %1671 = vmatprep.subr.mxu0 0.0
  %1672 = vmatpush1.msra.mxu0 %v1027
  %1673 = vmatprep.subr.mxu0 0.0
  %1674 = vmatpush1.msra.mxu0 %v1026
  %1675 = vmatprep.subr.mxu0 0.0
  %1676 = vmatpush2.msra.mxu0 0.0
  %1677 = vmatprep.subr.mxu0 0.0
  %1678 = vmatpush2.msra.mxu0 0.0
  %1679 = vmatprep.subr.mxu0 0.0
  %1680 = vmatpush2.msra.mxu0 0.0
  %1681 = vmatprep.subr.mxu0 0.0
  %1682 = vmatpush2.msra.mxu0 0.0
  %1683 = vmatprep.subr.mxu0 0.0
  %1684 = vmatpush2.msra.mxu0 0.0
  %1685 = vmatprep.subr.mxu0 0.0
  %1686 = vmatpush2.msra.mxu0 0.0
  %1687 = vmatprep.subr.mxu0 0.0
  %1688 = vmatpush2.msra.mxu0 0.0
  %1689 = vmatprep.subr.mxu0 0.0
  %1690 = vmatpush2.msra.mxu0 0.0
  %1691 = vmatprep.subr.mxu0 0.0
  %1692 = vmatpush2.msra.mxu0 0.0
  %1693 = vmatprep.subr.mxu0 0.0
  %1694 = vmatpush2.msra.mxu0 0.0
  %1695 = vmatprep.subr.mxu0 0.0
  %1696 = vmatpush2.msra.mxu0 0.0
  %1697 = vmatprep.subr.mxu0 0.0
  %1698 = vmatpush2.msra.mxu0 0.0
  %1699 = vmatprep.subr.mxu0 0.0
  %1700 = vmatpush2.msra.mxu0 0.0
  %1701 = vmatprep.subr.mxu0 0.0
  %1702 = vmatpush2.msra.mxu0 0.0
  %1703 = vmatprep.subr.mxu0 0.0
  %1704 = vmatpush2.msra.mxu0 0.0
  %1705 = vmatprep.subr.mxu0 0.0
  %1706 = vmatpush2.msra.mxu0 0.0
  %1707 = vmatprep.mubr.f32.mxu0 0.0
  %1708 = vmatmul.mubr.f32.gmra.mxu0 %v1641
  %v1709 = vpop.f32.mrf.mxu0
  %v1710 = vadd.f32 0.0, %v1709
  %v1711 = vpop.f32.mrf.mxu0
  %1712 = vdwg.mxu0
  %v1713 = vadd.f32 %v1637, %v1710
  %v1714 = vxor.u32 %v1713, 2147483648
  %v1715 = vmul.f32 %v1714, 1.442695
  %v1716 = vpow.pop %v1715
  %v1717 = vadd.f32 %v1716, 1.0
  %v1718 = vrcp.pop %v1717
  %v1719 = vmul.f32 1.0, %v1718
  %v1720 = vtanh.pop %v1713
  %v1721 = vmul.f32 %v1719, %v1629
  %1723 = vrot.lane.b32.xlu0 %v1720, 32
  %v1724 = vpop.permute.xlu0 %1723
  %v1726 = vmul.f32 %v1719, %v1724
  %1728 = vrot.lane.b32.xlu0 %v1726, 32
  %v1729 = vpop.permute.xlu0 %1728
  %v1731 = vadd.f32 %v1721, %v1729
  %v1732 = vtanh.pop %v1731
  %1734 = vrot.lane.b32.xlu0 %v1732, 32
  %v1735 = vpop.permute.xlu0 %1734
  %v1737 = vmul.f32 %v1719, %v1735
  %s1738 = scalar_lea.vmem [#allocation3], 56
  %v1739 = vld [vmem:[%s1738] sm:$0xff]
  %1741 = vrot.lane.b32.xlu0 %v1737, 64
  %v1742 = vpop.permute.xlu0 %1741
  %v1743 = vsel %vm31, %v1742, 0
  %1745 = vmatprep.subr.mxu0 0.0
  %1746 = vmatpush1.msra.mxu0 0.0
  %1747 = vmatprep.subr.mxu0 0.0
  %1748 = vmatpush1.msra.mxu0 0.0
  %1749 = vmatprep.subr.mxu0 0.0
  %1750 = vmatpush1.msra.mxu0 0.0
  %1751 = vmatprep.subr.mxu0 0.0
  %1752 = vmatpush1.msra.mxu0 0.0
  %1753 = vmatprep.subr.mxu0 0.0
  %1754 = vmatpush1.msra.mxu0 0.0
  %1755 = vmatprep.subr.mxu0 0.0
  %1756 = vmatpush1.msra.mxu0 0.0
  %1757 = vmatprep.subr.mxu0 0.0
  %1758 = vmatpush1.msra.mxu0 0.0
  %1759 = vmatprep.subr.mxu0 0.0
  %1760 = vmatpush1.msra.mxu0 0.0
  %1761 = vmatprep.subr.mxu0 0.0
  %1762 = vmatpush1.msra.mxu0 0.0
  %1763 = vmatprep.subr.mxu0 0.0
  %1764 = vmatpush1.msra.mxu0 0.0
  %1765 = vmatprep.subr.mxu0 0.0
  %1766 = vmatpush1.msra.mxu0 0.0
  %1767 = vmatprep.subr.mxu0 0.0
  %1768 = vmatpush1.msra.mxu0 0.0
  %1769 = vmatprep.subr.mxu0 0.0
  %1770 = vmatpush1.msra.mxu0 %v1029
  %1771 = vmatprep.subr.mxu0 0.0
  %1772 = vmatpush1.msra.mxu0 %v1028
  %1773 = vmatprep.subr.mxu0 0.0
  %1774 = vmatpush1.msra.mxu0 %v1027
  %1775 = vmatprep.subr.mxu0 0.0
  %1776 = vmatpush1.msra.mxu0 %v1026
  %1777 = vmatprep.subr.mxu0 0.0
  %1778 = vmatpush2.msra.mxu0 0.0
  %1779 = vmatprep.subr.mxu0 0.0
  %1780 = vmatpush2.msra.mxu0 0.0
  %1781 = vmatprep.subr.mxu0 0.0
  %1782 = vmatpush2.msra.mxu0 0.0
  %1783 = vmatprep.subr.mxu0 0.0
  %1784 = vmatpush2.msra.mxu0 0.0
  %1785 = vmatprep.subr.mxu0 0.0
  %1786 = vmatpush2.msra.mxu0 0.0
  %1787 = vmatprep.subr.mxu0 0.0
  %1788 = vmatpush2.msra.mxu0 0.0
  %1789 = vmatprep.subr.mxu0 0.0
  %1790 = vmatpush2.msra.mxu0 0.0
  %1791 = vmatprep.subr.mxu0 0.0
  %1792 = vmatpush2.msra.mxu0 0.0
  %1793 = vmatprep.subr.mxu0 0.0
  %1794 = vmatpush2.msra.mxu0 0.0
  %1795 = vmatprep.subr.mxu0 0.0
  %1796 = vmatpush2.msra.mxu0 0.0
  %1797 = vmatprep.subr.mxu0 0.0
  %1798 = vmatpush2.msra.mxu0 0.0
  %1799 = vmatprep.subr.mxu0 0.0
  %1800 = vmatpush2.msra.mxu0 0.0
  %1801 = vmatprep.subr.mxu0 0.0
  %1802 = vmatpush2.msra.mxu0 0.0
  %1803 = vmatprep.subr.mxu0 0.0
  %1804 = vmatpush2.msra.mxu0 0.0
  %1805 = vmatprep.subr.mxu0 0.0
  %1806 = vmatpush2.msra.mxu0 0.0
  %1807 = vmatprep.subr.mxu0 0.0
  %1808 = vmatpush2.msra.mxu0 0.0
  %1809 = vmatprep.mubr.f32.mxu0 0.0
  %1810 = vmatmul.mubr.f32.gmra.mxu0 %v1743
  %v1811 = vpop.f32.mrf.mxu0
  %v1812 = vadd.f32 0.0, %v1811
  %v1813 = vpop.f32.mrf.mxu0
  %1814 = vdwg.mxu0
  %v1815 = vadd.f32 %v1739, %v1812
  %v1816 = vxor.u32 %v1815, 2147483648
  %v1817 = vmul.f32 %v1816, 1.442695
  %v1818 = vpow.pop %v1817
  %v1819 = vadd.f32 %v1818, 1.0
  %v1820 = vrcp.pop %v1819
  %v1821 = vmul.f32 1.0, %v1820
  %v1822 = vtanh.pop %v1815
  %v1823 = vmul.f32 %v1821, %v1731
  %1825 = vrot.lane.b32.xlu0 %v1822, 32
  %v1826 = vpop.permute.xlu0 %1825
  %v1828 = vmul.f32 %v1821, %v1826
  %1830 = vrot.lane.b32.xlu0 %v1828, 32
  %v1831 = vpop.permute.xlu0 %1830
  %v1833 = vadd.f32 %v1823, %v1831
  %v1834 = vtanh.pop %v1833
  %1836 = vrot.lane.b32.xlu0 %v1834, 32
  %v1837 = vpop.permute.xlu0 %1836
  %v1839 = vmul.f32 %v1821, %v1837
  %v1840 = vld [vmem:[%s5] sm:$0xff]
  %v1841 = vld [vmem:[%s5 + $0x8] sm:$0xff]
  %v1842 = vld [vmem:[%s5 + $0x10] sm:$0xff]
  %v1843 = vld [vmem:[%s5 + $0x18] sm:$0xff]
  %v1844 = vld [vmem:[%s6] sm:$0x1]
  %v1846 = vlaneseq
  %v1847 = vshrl.u32 %v1846, 7
  %v1848 = vsub.s32 0, %v1847
  %v1849 = vrot.slane %v1844, %v1848
  %1852 = vrot.lane.b32.xlu0 %v1839, 64
  %v1853 = vpop.permute.xlu0 %1852
  %v1854 = vsel %vm31, %v1853, 0
  %1856 = vmatprep.subr.mxu0 0.0
  %1857 = vmatpush1.msra.mxu0 0.0
  %1858 = vmatprep.subr.mxu0 0.0
  %1859 = vmatpush1.msra.mxu0 0.0
  %1860 = vmatprep.subr.mxu0 0.0
  %1861 = vmatpush1.msra.mxu0 0.0
  %1862 = vmatprep.subr.mxu0 0.0
  %1863 = vmatpush1.msra.mxu0 0.0
  %1864 = vmatprep.subr.mxu0 0.0
  %1865 = vmatpush1.msra.mxu0 0.0
  %1866 = vmatprep.subr.mxu0 0.0
  %1867 = vmatpush1.msra.mxu0 0.0
  %1868 = vmatprep.subr.mxu0 0.0
  %1869 = vmatpush1.msra.mxu0 0.0
  %1870 = vmatprep.subr.mxu0 0.0
  %1871 = vmatpush1.msra.mxu0 0.0
  %1872 = vmatprep.subr.mxu0 0.0
  %1873 = vmatpush1.msra.mxu0 0.0
  %1874 = vmatprep.subr.mxu0 0.0
  %1875 = vmatpush1.msra.mxu0 0.0
  %1876 = vmatprep.subr.mxu0 0.0
  %1877 = vmatpush1.msra.mxu0 0.0
  %1878 = vmatprep.subr.mxu0 0.0
  %1879 = vmatpush1.msra.mxu0 0.0
  %1880 = vmatprep.subr.mxu0 0.0
  %1881 = vmatpush1.msra.mxu0 %v1843
  %1882 = vmatprep.subr.mxu0 0.0
  %1883 = vmatpush1.msra.mxu0 %v1842
  %1884 = vmatprep.subr.mxu0 0.0
  %1885 = vmatpush1.msra.mxu0 %v1841
  %1886 = vmatprep.subr.mxu0 0.0
  %1887 = vmatpush1.msra.mxu0 %v1840
  %1888 = vmatprep.subr.mxu0 0.0
  %1889 = vmatpush2.msra.mxu0 0.0
  %1890 = vmatprep.subr.mxu0 0.0
  %1891 = vmatpush2.msra.mxu0 0.0
  %1892 = vmatprep.subr.mxu0 0.0
  %1893 = vmatpush2.msra.mxu0 0.0
  %1894 = vmatprep.subr.mxu0 0.0
  %1895 = vmatpush2.msra.mxu0 0.0
  %1896 = vmatprep.subr.mxu0 0.0
  %1897 = vmatpush2.msra.mxu0 0.0
  %1898 = vmatprep.subr.mxu0 0.0
  %1899 = vmatpush2.msra.mxu0 0.0
  %1900 = vmatprep.subr.mxu0 0.0
  %1901 = vmatpush2.msra.mxu0 0.0
  %1902 = vmatprep.subr.mxu0 0.0
  %1903 = vmatpush2.msra.mxu0 0.0
  %1904 = vmatprep.subr.mxu0 0.0
  %1905 = vmatpush2.msra.mxu0 0.0
  %1906 = vmatprep.subr.mxu0 0.0
  %1907 = vmatpush2.msra.mxu0 0.0
  %1908 = vmatprep.subr.mxu0 0.0
  %1909 = vmatpush2.msra.mxu0 0.0
  %1910 = vmatprep.subr.mxu0 0.0
  %1911 = vmatpush2.msra.mxu0 0.0
  %1912 = vmatprep.subr.mxu0 0.0
  %1913 = vmatpush2.msra.mxu0 0.0
  %1914 = vmatprep.subr.mxu0 0.0
  %1915 = vmatpush2.msra.mxu0 0.0
  %1916 = vmatprep.subr.mxu0 0.0
  %1917 = vmatpush2.msra.mxu0 0.0
  %1918 = vmatprep.subr.mxu0 0.0
  %1919 = vmatpush2.msra.mxu0 0.0
  %1920 = vmatprep.mubr.f32.mxu0 0.0
  %1921 = vmatmul.mubr.f32.gmra.mxu0 %v1854
  %v1922 = vpop.f32.mrf.mxu0
  %v1923 = vadd.f32 %v1849, %v1922
  %v1924 = vpop.f32.mrf.mxu0
  %1925 = vdwg.mxu0
  %1926 = vst [vmem:[%s7] sm:$0xff] %v1923
  // Predicated region
  $region30: #{lstm_forward.1} parent=0 // pred_check
    _
  $region31: #{lstm_forward.1} parent=0 // pred_check_branch
    %1928 = sbr.rel (0) target = $region33
  $region32: #{lstm_forward.1} parent=0 // pred_region
    _
  $region33: #{lstm_forward.1} parent=0 // pred_fallthru
    _
  // Predicated region
  $region34: #{lstm_forward.1} parent=0 // pred_check
    _
  $region35: #{lstm_forward.1} parent=0 // pred_check_branch
    %1930 = sbr.rel (0) target = $region37
  $region36: #{lstm_forward.1} parent=0 // pred_region
    _
  $region37: #{lstm_forward.1} parent=0 // pred_fallthru
    _

</llo_original>
